<compile_context>
chip_gen: v6e
topology: v6e:2x2x1
jax: 0.10.0
libtpu: 0.0.40
codegen_flags: <defaults>
</compile_context>

<pallas_src>
import functools
import math

import jax
import jax.numpy as jnp
from jax.experimental import pallas as pl
from jax.experimental.pallas import tpu as pltpu


BLOCK_T = 8           # timesteps per LSTM grid step
DECODER_ROW_TILE = 256  # rows per decoder/CE grid step (when N is large)


def _round_up(x, m):
    return ((x + m - 1) // m) * m


# ------------------------- LSTM layer kernel (grid over time blocks) ----------
def lstm_layer_kernel(gx_ref, whh_ref, len_ref, out_ref, h_ref, c_ref, *,
                      hidden_size, block_t):
    """gx_ref: (block_t, Bp, 4*Hp) precomputed x@W_ih^T + b  (f32)
       whh_ref: (Hp, 4*Hp) recurrent weights (bf16)
       len_ref: (Bp, 1) int32 sequence lengths
       out_ref: (block_t, Bp, Hp) layer outputs (zero at padded positions)
       h_ref/c_ref: (Bp, Hp) f32 carries across grid steps."""
    Hp = hidden_size
    blk = pl.program_id(0)

    @pl.when(blk == 0)
    def _():
        # nn.LSTM(packed) with hx=None -> zero initial hidden/cell state
        h_ref[...] = jnp.zeros_like(h_ref)
        c_ref[...] = jnp.zeros_like(c_ref)

    lens = len_ref[...]                 # (Bp, 1) int32
    whh = whh_ref[...]                  # (Hp, 4Hp) bf16

    h = h_ref[...]                      # (Bp, Hp) f32
    c = c_ref[...]

    # Statically unrolled time loop within the block.
    for i in range(block_t):
        t = blk * block_t + i
        gates = gx_ref[i] + jnp.dot(h.astype(jnp.bfloat16), whh,
                                    preferred_element_type=jnp.float32)  # (Bp,4Hp)

        i_g = jax.nn.sigmoid(gates[:, 0 * Hp:1 * Hp])
        f_g = jax.nn.sigmoid(gates[:, 1 * Hp:2 * Hp])
        g_g = jnp.tanh(gates[:, 2 * Hp:3 * Hp])
        o_g = jax.nn.sigmoid(gates[:, 3 * Hp:4 * Hp])

        c_new = f_g * c + i_g * g_g
        h_new = o_g * jnp.tanh(c_new)

        # Packed-sequence semantics: state does not advance past sequence end,
        # padded output positions are zero (pad_packed_sequence).
        m = (t < lens).astype(jnp.float32)        # (Bp, 1)
        c = m * c_new + (1.0 - m) * c
        h = m * h_new + (1.0 - m) * h
        out_ref[i] = m * h_new

    h_ref[...] = h
    c_ref[...] = c


def run_lstm_layer(gx, w_hh_t_bf16, lens2d, block_t):
    Tp, Bp, G4 = gx.shape
    Hp = G4 // 4
    n_blocks = Tp // block_t
    kern = functools.partial(lstm_layer_kernel, hidden_size=Hp, block_t=block_t)
    return pl.pallas_call(
        kern,
        out_shape=jax.ShapeDtypeStruct((Tp, Bp, Hp), jnp.float32),
        grid_spec=pltpu.PrefetchScalarGridSpec(
            num_scalar_prefetch=0,
            grid=(n_blocks,),
            in_specs=[
                pl.BlockSpec((block_t, Bp, G4), lambda b: (b, 0, 0)),  # gates_x
                pl.BlockSpec((Hp, G4), lambda b: (0, 0)),              # W_hh^T
                pl.BlockSpec((Bp, 1), lambda b: (0, 0)),               # lengths
            ],
            out_specs=pl.BlockSpec((block_t, Bp, Hp), lambda b: (b, 0, 0)),
            scratch_shapes=[pltpu.VMEM((Bp, Hp), jnp.float32),   # h carry
                            pltpu.VMEM((Bp, Hp), jnp.float32)],  # c carry
        ),
        compiler_params=pltpu.CompilerParams(
            dimension_semantics=("arbitrary",)),        # time is serial
    )(gx, w_hh_t_bf16, lens2d)


# ----------------- Decoder matmul + cross-entropy kernel (tiled over rows) -----
def decoder_ce_kernel(x_ref, w_ref, b_ref, tgt_ref, feat_ref, loss_ref, *,
                      pad_idx, v_actual):
    logits = (jnp.dot(x_ref[...].astype(jnp.bfloat16), w_ref[...],
                      preferred_element_type=jnp.float32)
              + b_ref[...])                                          # (tn, Vp) f32
    feat_ref[...] = logits

    col = jax.lax.broadcasted_iota(jnp.int32, logits.shape, 1)
    col_valid = col < v_actual                     # mask out vocab padding lanes

    masked = jnp.where(col_valid, logits, jnp.float32(-1e30))
    m = jnp.max(masked, axis=-1, keepdims=True)
    p = jnp.where(col_valid, jnp.exp(logits - m), 0.0)
    lse = jnp.log(jnp.sum(p, axis=-1, keepdims=True)) + m            # (tn, 1)

    tgt = tgt_ref[...]                                               # (tn, 1) i32
    tgt_logit = jnp.sum(jnp.where(col == tgt, logits, 0.0),
                        axis=-1, keepdims=True)                      # (tn, 1)

    valid = (tgt != pad_idx).astype(jnp.float32)
    loss_ref[...] = valid * (lse - tgt_logit)                        # per-row loss


def run_decoder_ce(x_flat, w_dec_t_bf16, b_dec, tgt_flat, pad_idx, v_actual, tn):
    N, Hp = x_flat.shape
    Vp = w_dec_t_bf16.shape[1]
    kern = functools.partial(decoder_ce_kernel, pad_idx=pad_idx, v_actual=v_actual)
    # TODO(synk): for very large vocabularies, additionally tile the V axis with
    # an online max/LSE accumulation instead of keeping the full (Hp, Vp) tile.
    return pl.pallas_call(
        kern,
        out_shape=(jax.ShapeDtypeStruct((N, Vp), jnp.float32),
                   jax.ShapeDtypeStruct((N, 1), jnp.float32)),
        grid_spec=pltpu.PrefetchScalarGridSpec(
            num_scalar_prefetch=0,
            grid=(N // tn,),
            in_specs=[
                pl.BlockSpec((tn, Hp), lambda i: (i, 0)),   # hidden states
                pl.BlockSpec((Hp, Vp), lambda i: (0, 0)),   # decoder W^T (bf16)
                pl.BlockSpec((1, Vp), lambda i: (0, 0)),    # decoder bias
                pl.BlockSpec((tn, 1), lambda i: (i, 0)),    # targets
            ],
            out_specs=(pl.BlockSpec((tn, Vp), lambda i: (i, 0)),
                       pl.BlockSpec((tn, 1), lambda i: (i, 0))),
        ),
        compiler_params=pltpu.CompilerParams(
            dimension_semantics=("parallel",)),
    )(x_flat, w_dec_t_bf16, b_dec, tgt_flat)


# --------------------------------- forward ------------------------------------
def my_language_model_forward(batch, lengths, params, pad_idx):
    """batch: (B, S) int32 token ids; lengths: (B,) int32, sorted descending."""
    inputs = batch[:, :-1]                                  # (B, T)
    targets = batch[:, 1:]                                  # (B, T)
    B, T = inputs.shape

    Hp = params["hidden_pad"]
    V = params["vocab"]
    Vp = params["dec_w_t"].shape[1]

    # Pad batch to a sublane multiple and time to a BLOCK_T multiple.
    Bp = _round_up(B, 8)
    Tp = _round_up(T, BLOCK_T)
    inputs_p = jnp.pad(inputs, ((0, Bp - B), (0, Tp - T)),
                       constant_values=pad_idx)
    targets_p = jnp.pad(targets, ((0, Bp - B), (0, Tp - T)),
                        constant_values=pad_idx)
    lengths_p = jnp.pad(lengths.astype(jnp.int32), (0, Bp - B))
    lens2d = lengths_p.reshape(Bp, 1)                       # (Bp, 1) i32

    # Embedding lookup (glue, plain JAX gather).
    emb = jnp.take(params["enc_w"], inputs_p, axis=0)       # (Bp, Tp, E)
    x = jnp.transpose(emb, (1, 0, 2)).astype(jnp.float32)   # (Tp, Bp, E)

    # TODO(synk): dropout path (self.drop / inter-layer LSTM dropout) omitted —
    # module is run with dropout=0.0.
    for layer in params["lstm"]:
        F_in = x.shape[-1]
        # Hoisted input projection: one big bf16 GEMM over all timesteps.
        gx = (jnp.dot(x.reshape(Tp * Bp, F_in).astype(jnp.bfloat16),
                      layer["w_ih_t"].astype(jnp.bfloat16),
                      preferred_element_type=jnp.float32)
              + layer["b"]).reshape(Tp, Bp, 4 * Hp)
        x = run_lstm_layer(gx, layer["w_hh_t"].astype(jnp.bfloat16),
                           lens2d, BLOCK_T)                 # (Tp, Bp, Hp)

    # Decoder + CE, tiled over flattened (t, b) rows.
    x_flat = x.reshape(Tp * Bp, Hp)
    tgt_flat = jnp.transpose(targets_p, (1, 0)).reshape(Tp * Bp, 1).astype(jnp.int32)
    N = Tp * Bp
    if N <= DECODER_ROW_TILE:
        tn, N_pad = N, N
    else:
        tn = DECODER_ROW_TILE
        N_pad = _round_up(N, tn)
        x_flat = jnp.pad(x_flat, ((0, N_pad - N), (0, 0)))
        tgt_flat = jnp.pad(tgt_flat, ((0, N_pad - N), (0, 0)),
                           constant_values=pad_idx)

    feat_flat, loss_rows = run_decoder_ce(
        x_flat, params["dec_w_t"].astype(jnp.bfloat16), params["dec_b"],
        tgt_flat, pad_idx, V, tn)

    features = jnp.transpose(feat_flat[:N].reshape(Tp, Bp, Vp),
                             (1, 0, 2))[:B, :T, :V]          # (B, T, V)

    num_words = jnp.sum(lengths)
    # TODO(synk): reduce_loss=False (per-token, reduction='none') path not wired
    # up, though loss_rows already carries per-position losses.
    loss = jnp.sum(loss_rows) / num_words.astype(jnp.float32)
    return loss, num_words, features


# ------------------------------ parameter init ---------------------------------
def _pad_gate_weight(w, h, hp, in_pad):
    """w: (4h, in) PyTorch layout, gate order [i, f, g, o] -> (in_pad, 4*hp)."""
    four_h, n_in = w.shape
    w4 = w.reshape(4, h, n_in)                              # (gate, out_h, in)
    w4 = jnp.pad(w4, ((0, 0), (0, hp - h), (0, in_pad - n_in)))
    return jnp.transpose(w4, (2, 0, 1)).reshape(in_pad, 4 * hp)


def _pad_gate_bias(b, h, hp):
    b4 = jnp.pad(b.reshape(4, h), ((0, 0), (0, hp - h)))
    return b4.reshape(1, 4 * hp)


def init_params(key, vocab_size, embedding_size, hidden_size, nlayers):
    keys = jax.random.split(key, 2 + 4 * nlayers)
    initrange = 0.1
    Hp = _round_up(hidden_size, 128)
    Vp = _round_up(vocab_size, 128)

    enc_w = jax.random.uniform(keys[0], (vocab_size, embedding_size),
                               jnp.float32, -initrange, initrange)
    dec_w = jax.random.uniform(keys[1], (vocab_size, hidden_size),
                               jnp.float32, -initrange, initrange)
    dec_w_t = jnp.pad(jnp.transpose(dec_w),
                      ((0, Hp - hidden_size), (0, Vp - vocab_size)))   # (Hp, Vp)
    dec_b = jnp.zeros((1, Vp), jnp.float32)

    lstm = []
    stdv = 1.0 / math.sqrt(hidden_size)
    for layer in range(nlayers):
        in_size = embedding_size if layer == 0 else hidden_size
        in_pad = embedding_size if layer == 0 else Hp
        k0, k1, k2, k3 = keys[2 + 4 * layer: 6 + 4 * layer]
        w_ih = jax.random.uniform(k0, (4 * hidden_size, in_size),
                                  jnp.float32, -stdv, stdv)
        w_hh = jax.random.uniform(k1, (4 * hidden_size, hidden_size),
                                  jnp.float32, -stdv, stdv)
        b_ih = jax.random.uniform(k2, (4 * hidden_size,), jnp.float32, -stdv, stdv)
        b_hh = jax.random.uniform(k3, (4 * hidden_size,), jnp.float32, -stdv, stdv)
        lstm.append({
            "w_ih_t": _pad_gate_weight(w_ih, hidden_size, Hp, in_pad),  # (in,4Hp)
            "w_hh_t": _pad_gate_weight(w_hh, hidden_size, Hp, Hp),      # (Hp,4Hp)
            "b": _pad_gate_bias(b_ih + b_hh, hidden_size, Hp),          # (1,4Hp)
        })
    return {"enc_w": enc_w, "dec_w_t": dec_w_t, "dec_b": dec_b, "lstm": lstm,
            "hidden_size": hidden_size, "hidden_pad": Hp, "vocab": vocab_size}


# ----------------------------------- main ---------------------------------------
if __name__ == "__main__":
    B = 2            # batch size
    S = 8            # sequence length (incl. <START>); inputs/targets have T = S-1
    E = 32           # embedding_size
    H = 32           # hidden_size
    NLAYERS = 2
    VOCAB = 16       # len(dictionary)
    PAD_IDX = 0      # dictionary.get_idx_for_item('<pad>')

    key = jax.random.PRNGKey(0)
    kp, kt = jax.random.split(key)
    params = init_params(kp, VOCAB, E, H, NLAYERS)

    # Build a batch the way get_word_indices_tensor does: pad-filled, sorted by length.
    lengths = jnp.array([S - 1, 5], dtype=jnp.int32)        # descending, max == S-1
    tokens = jax.random.randint(kt, (B, S), 1, VOCAB, dtype=jnp.int32)
    pos = jnp.arange(S)[None, :]
    batch = jnp.where(pos < (lengths[:, None] + 1), tokens, PAD_IDX)

    loss, num_words, features = my_language_model_forward(
        batch, lengths, params, PAD_IDX)

    jax.block_until_ready((loss, num_words, features))
    assert features.shape == (B, S - 1, VOCAB)
    assert bool(jnp.isfinite(loss))
    print("KERNEL_OK")
</pallas_src>

<mosaic_0001>
module attributes {stable_mosaic.version = 11 : i64} {
  func.func @lstm_layer_kernel(%arg0: i32, %arg1: memref<8x8x512xf32, #tpu.memory_space<vmem>>, %arg2: memref<128x512xbf16, #tpu.memory_space<vmem>>, %arg3: memref<8x1xi32, #tpu.memory_space<vmem>>, %arg4: memref<8x8x128xf32, #tpu.memory_space<vmem>>, %arg5: memref<8x128xf32, #tpu.memory_space<vmem>>, %arg6: memref<8x128xf32, #tpu.memory_space<vmem>>) attributes {dimension_semantics = [#tpu.dimension_semantics<arbitrary>], iteration_bounds = array<i64: 1>, scalar_prefetch = 0 : i64, scratch_operands = 2 : i64, tpu.core_type = #tpu.core_type<tc>, window_params = [{transform_indices = @transform_0, window_bounds = array<i64: 8, 8, 512>}, {pipeline_mode = #tpu.pipeline_mode<synchronous>, transform_indices = @transform_1, window_bounds = array<i64: 128, 512>}, {pipeline_mode = #tpu.pipeline_mode<synchronous>, transform_indices = @transform_2, window_bounds = array<i64: 8, 1>}, {transform_indices = @transform_3, window_bounds = array<i64: 8, 8, 128>}]} {
    %c0_i32 = arith.constant 0 : i32
    %0 = arith.cmpi eq, %arg0, %c0_i32 : i32
    %1 = arith.extui %0 : i1 to i32
    %c0_i32_0 = arith.constant 0 : i32
    %2 = arith.cmpi ne, %1, %c0_i32_0 : i32
    scf.if %2 {
      %cst_108 = arith.constant 0.000000e+00 : f32
      %449 = vector.broadcast %cst_108 : f32 to vector<8x128xf32>
      %c0_109 = arith.constant 0 : index
      %c0_110 = arith.constant 0 : index
      %450 = vector.load %arg5[%c0_109, %c0_110] : memref<8x128xf32, #tpu.memory_space<vmem>>, vector<8x128xf32>
      tpu.vector_store %arg5[%c0_109, %c0_110], %449 {strides = array<i32>} : memref<8x128xf32, #tpu.memory_space<vmem>>, vector<8x128xf32>,
      %cst_111 = arith.constant 0.000000e+00 : f32
      %451 = vector.broadcast %cst_111 : f32 to vector<8x128xf32>
      %c0_112 = arith.constant 0 : index
      %c0_113 = arith.constant 0 : index
      %452 = vector.load %arg6[%c0_112, %c0_113] : memref<8x128xf32, #tpu.memory_space<vmem>>, vector<8x128xf32>
      tpu.vector_store %arg6[%c0_112, %c0_113], %451 {strides = array<i32>} : memref<8x128xf32, #tpu.memory_space<vmem>>, vector<8x128xf32>,
    } else {
    }
    %c0 = arith.constant 0 : index
    %c0_1 = arith.constant 0 : index
    %3 = vector.load %arg3[%c0, %c0_1] : memref<8x1xi32, #tpu.memory_space<vmem>>, vector<8x1xi32>
    %c0_2 = arith.constant 0 : index
    %c0_3 = arith.constant 0 : index
    %4 = vector.load %arg2[%c0_2, %c0_3] : memref<128x512xbf16, #tpu.memory_space<vmem>>, vector<128x512xbf16>
    %c0_4 = arith.constant 0 : index
    %c0_5 = arith.constant 0 : index
    %5 = vector.load %arg5[%c0_4, %c0_5] : memref<8x128xf32, #tpu.memory_space<vmem>>, vector<8x128xf32>
    %c0_6 = arith.constant 0 : index
    %c0_7 = arith.constant 0 : index
    %6 = vector.load %arg6[%c0_6, %c0_7] : memref<8x128xf32, #tpu.memory_space<vmem>>, vector<8x128xf32>
    %c8_i32 = arith.constant 8 : i32
    %7 = arith.muli %arg0, %c8_i32 : i32
    %c0_i32_8 = arith.constant 0 : i32
    %8 = arith.addi %7, %c0_i32_8 : i32
    %c0_9 = arith.constant 0 : index
    %c0_10 = arith.constant 0 : index
    %c0_11 = arith.constant 0 : index
    %9 = vector.load %arg1[%c0_9, %c0_10, %c0_11] : memref<8x8x512xf32, #tpu.memory_space<vmem>>, vector<1x8x512xf32>
    %10 = vector.shape_cast %9 : vector<1x8x512xf32> to vector<8x512xf32>
    %11 = arith.truncf %5 : vector<8x128xf32> to vector<8x128xbf16>
    %cst = arith.constant dense<0.000000e+00> : vector<8x512xf32>
    %12 = tpu.matmul %11, %4, %cst {dimension_numbers = #tpu.dot_dimension_numbers<[1], [0], [0], [1], [0, 0, 1, 1], [], []>} : vector<8x128xbf16>, vector<128x512xbf16>, vector<8x512xf32> -> vector<8x512xf32>
    %13 = arith.addf %10, %12 : vector<8x512xf32>
    %14 = vector.extract_strided_slice %13 {offsets = [0, 0], sizes = [8, 128], strides = [1, 1]} : vector<8x512xf32> to vector<8x128xf32>
    %15 = arith.negf %14 : vector<8x128xf32>
    %16 = math.exp %15 : vector<8x128xf32>
    %cst_12 = arith.constant 1.000000e+00 : f32
    %17 = vector.broadcast %cst_12 : f32 to vector<8x128xf32>
    %18 = arith.addf %17, %16 : vector<8x128xf32>
    %19 = arith.divf %17, %18 : vector<8x128xf32>
    %20 = vector.extract_strided_slice %13 {offsets = [0, 128], sizes = [8, 128], strides = [1, 1]} : vector<8x512xf32> to vector<8x128xf32>
    %21 = arith.negf %20 : vector<8x128xf32>
    %22 = math.exp %21 : vector<8x128xf32>
    %cst_13 = arith.constant 1.000000e+00 : f32
    %23 = vector.broadcast %cst_13 : f32 to vector<8x128xf32>
    %24 = arith.addf %23, %22 : vector<8x128xf32>
    %25 = arith.divf %23, %24 : vector<8x128xf32>
    %26 = vector.extract_strided_slice %13 {offsets = [0, 256], sizes = [8, 128], strides = [1, 1]} : vector<8x512xf32> to vector<8x128xf32>
    %27 = math.tanh %26 : vector<8x128xf32>
    %28 = vector.extract_strided_slice %13 {offsets = [0, 384], sizes = [8, 128], strides = [1, 1]} : vector<8x512xf32> to vector<8x128xf32>
    %29 = arith.negf %28 : vector<8x128xf32>
    %30 = math.exp %29 : vector<8x128xf32>
    %cst_14 = arith.constant 1.000000e+00 : f32
    %31 = vector.broadcast %cst_14 : f32 to vector<8x128xf32>
    %32 = arith.addf %31, %30 : vector<8x128xf32>
    %33 = arith.divf %31, %32 : vector<8x128xf32>
    %34 = arith.mulf %25, %6 : vector<8x128xf32>
    %35 = arith.mulf %19, %27 : vector<8x128xf32>
    %36 = arith.addf %34, %35 : vector<8x128xf32>
    %37 = math.tanh %36 : vector<8x128xf32>
    %38 = arith.mulf %33, %37 : vector<8x128xf32>
    %39 = vector.broadcast %8 : i32 to vector<8x1xi32>
    %40 = arith.cmpi slt, %39, %3 : vector<8x1xi32>
    %41 = arith.extui %40 : vector<8x1xi1> to vector<8x1xi32>
    %42 = arith.sitofp %41 : vector<8x1xi32> to vector<8x1xf32>
    %43 = vector.broadcast %42 : vector<8x1xf32> to vector<8x128xf32>
    %44 = arith.mulf %43, %36 : vector<8x128xf32>
    %cst_15 = arith.constant 1.000000e+00 : f32
    %45 = vector.broadcast %cst_15 : f32 to vector<8x1xf32>
    %46 = arith.subf %45, %42 : vector<8x1xf32>
    %47 = vector.broadcast %46 : vector<8x1xf32> to vector<8x128xf32>
    %48 = arith.mulf %47, %6 : vector<8x128xf32>
    %49 = arith.addf %44, %48 : vector<8x128xf32>
    %50 = vector.broadcast %42 : vector<8x1xf32> to vector<8x128xf32>
    %51 = arith.mulf %50, %38 : vector<8x128xf32>
    %cst_16 = arith.constant 1.000000e+00 : f32
    %52 = vector.broadcast %cst_16 : f32 to vector<8x1xf32>
    %53 = arith.subf %52, %42 : vector<8x1xf32>
    %54 = vector.broadcast %53 : vector<8x1xf32> to vector<8x128xf32>
    %55 = arith.mulf %54, %5 : vector<8x128xf32>
    %56 = arith.addf %51, %55 : vector<8x128xf32>
    %57 = vector.broadcast %42 : vector<8x1xf32> to vector<8x128xf32>
    %58 = arith.mulf %57, %38 : vector<8x128xf32>
    %c0_17 = arith.constant 0 : index
    %c0_18 = arith.constant 0 : index
    %c0_19 = arith.constant 0 : index
    %59 = vector.load %arg4[%c0_17, %c0_18, %c0_19] : memref<8x8x128xf32, #tpu.memory_space<vmem>>, vector<1x8x128xf32>
    %60 = vector.shape_cast %59 : vector<1x8x128xf32> to vector<8x128xf32>
    %61 = vector.shape_cast %58 : vector<8x128xf32> to vector<1x8x128xf32>
    tpu.vector_store %arg4[%c0_17, %c0_18, %c0_19], %61 {strides = array<i32>} : memref<8x8x128xf32, #tpu.memory_space<vmem>>, vector<1x8x128xf32>,
    %c8_i32_20 = arith.constant 8 : i32
    %62 = arith.muli %arg0, %c8_i32_20 : i32
    %c1_i32 = arith.constant 1 : i32
    %63 = arith.addi %62, %c1_i32 : i32
    %c1 = arith.constant 1 : index
    %c0_21 = arith.constant 0 : index
    %c0_22 = arith.constant 0 : index
    %64 = vector.load %arg1[%c1, %c0_21, %c0_22] : memref<8x8x512xf32, #tpu.memory_space<vmem>>, vector<1x8x512xf32>
    %65 = vector.shape_cast %64 : vector<1x8x512xf32> to vector<8x512xf32>
    %66 = arith.truncf %56 : vector<8x128xf32> to vector<8x128xbf16>
    %cst_23 = arith.constant dense<0.000000e+00> : vector<8x512xf32>
    %67 = tpu.matmul %66, %4, %cst_23 {dimension_numbers = #tpu.dot_dimension_numbers<[1], [0], [0], [1], [0, 0, 1, 1], [], []>} : vector<8x128xbf16>, vector<128x512xbf16>, vector<8x512xf32> -> vector<8x512xf32>
    %68 = arith.addf %65, %67 : vector<8x512xf32>
    %69 = vector.extract_strided_slice %68 {offsets = [0, 0], sizes = [8, 128], strides = [1, 1]} : vector<8x512xf32> to vector<8x128xf32>
    %70 = arith.negf %69 : vector<8x128xf32>
    %71 = math.exp %70 : vector<8x128xf32>
    %cst_24 = arith.constant 1.000000e+00 : f32
    %72 = vector.broadcast %cst_24 : f32 to vector<8x128xf32>
    %73 = arith.addf %72, %71 : vector<8x128xf32>
    %74 = arith.divf %72, %73 : vector<8x128xf32>
    %75 = vector.extract_strided_slice %68 {offsets = [0, 128], sizes = [8, 128], strides = [1, 1]} : vector<8x512xf32> to vector<8x128xf32>
    %76 = arith.negf %75 : vector<8x128xf32>
    %77 = math.exp %76 : vector<8x128xf32>
    %cst_25 = arith.constant 1.000000e+00 : f32
    %78 = vector.broadcast %cst_25 : f32 to vector<8x128xf32>
    %79 = arith.addf %78, %77 : vector<8x128xf32>
    %80 = arith.divf %78, %79 : vector<8x128xf32>
    %81 = vector.extract_strided_slice %68 {offsets = [0, 256], sizes = [8, 128], strides = [1, 1]} : vector<8x512xf32> to vector<8x128xf32>
    %82 = math.tanh %81 : vector<8x128xf32>
    %83 = vector.extract_strided_slice %68 {offsets = [0, 384], sizes = [8, 128], strides = [1, 1]} : vector<8x512xf32> to vector<8x128xf32>
    %84 = arith.negf %83 : vector<8x128xf32>
    %85 = math.exp %84 : vector<8x128xf32>
    %cst_26 = arith.constant 1.000000e+00 : f32
    %86 = vector.broadcast %cst_26 : f32 to vector<8x128xf32>
    %87 = arith.addf %86, %85 : vector<8x128xf32>
    %88 = arith.divf %86, %87 : vector<8x128xf32>
    %89 = arith.mulf %80, %49 : vector<8x128xf32>
    %90 = arith.mulf %74, %82 : vector<8x128xf32>
    %91 = arith.addf %89, %90 : vector<8x128xf32>
    %92 = math.tanh %91 : vector<8x128xf32>
    %93 = arith.mulf %88, %92 : vector<8x128xf32>
    %94 = vector.broadcast %63 : i32 to vector<8x1xi32>
    %95 = arith.cmpi slt, %94, %3 : vector<8x1xi32>
    %96 = arith.extui %95 : vector<8x1xi1> to vector<8x1xi32>
    %97 = arith.sitofp %96 : vector<8x1xi32> to vector<8x1xf32>
    %98 = vector.broadcast %97 : vector<8x1xf32> to vector<8x128xf32>
    %99 = arith.mulf %98, %91 : vector<8x128xf32>
    %cst_27 = arith.constant 1.000000e+00 : f32
    %100 = vector.broadcast %cst_27 : f32 to vector<8x1xf32>
    %101 = arith.subf %100, %97 : vector<8x1xf32>
    %102 = vector.broadcast %101 : vector<8x1xf32> to vector<8x128xf32>
    %103 = arith.mulf %102, %49 : vector<8x128xf32>
    %104 = arith.addf %99, %103 : vector<8x128xf32>
    %105 = vector.broadcast %97 : vector<8x1xf32> to vector<8x128xf32>
    %106 = arith.mulf %105, %93 : vector<8x128xf32>
    %cst_28 = arith.constant 1.000000e+00 : f32
    %107 = vector.broadcast %cst_28 : f32 to vector<8x1xf32>
    %108 = arith.subf %107, %97 : vector<8x1xf32>
    %109 = vector.broadcast %108 : vector<8x1xf32> to vector<8x128xf32>
    %110 = arith.mulf %109, %56 : vector<8x128xf32>
    %111 = arith.addf %106, %110 : vector<8x128xf32>
    %112 = vector.broadcast %97 : vector<8x1xf32> to vector<8x128xf32>
    %113 = arith.mulf %112, %93 : vector<8x128xf32>
    %c1_29 = arith.constant 1 : index
    %c0_30 = arith.constant 0 : index
    %c0_31 = arith.constant 0 : index
    %114 = vector.load %arg4[%c1_29, %c0_30, %c0_31] : memref<8x8x128xf32, #tpu.memory_space<vmem>>, vector<1x8x128xf32>
    %115 = vector.shape_cast %114 : vector<1x8x128xf32> to vector<8x128xf32>
    %116 = vector.shape_cast %113 : vector<8x128xf32> to vector<1x8x128xf32>
    tpu.vector_store %arg4[%c1_29, %c0_30, %c0_31], %116 {strides = array<i32>} : memref<8x8x128xf32, #tpu.memory_space<vmem>>, vector<1x8x128xf32>,
    %c8_i32_32 = arith.constant 8 : i32
    %117 = arith.muli %arg0, %c8_i32_32 : i32
    %c2_i32 = arith.constant 2 : i32
    %118 = arith.addi %117, %c2_i32 : i32
    %c2 = arith.constant 2 : index
    %c0_33 = arith.constant 0 : index
    %c0_34 = arith.constant 0 : index
    %119 = vector.load %arg1[%c2, %c0_33, %c0_34] : memref<8x8x512xf32, #tpu.memory_space<vmem>>, vector<1x8x512xf32>
    %120 = vector.shape_cast %119 : vector<1x8x512xf32> to vector<8x512xf32>
    %121 = arith.truncf %111 : vector<8x128xf32> to vector<8x128xbf16>
    %cst_35 = arith.constant dense<0.000000e+00> : vector<8x512xf32>
    %122 = tpu.matmul %121, %4, %cst_35 {dimension_numbers = #tpu.dot_dimension_numbers<[1], [0], [0], [1], [0, 0, 1, 1], [], []>} : vector<8x128xbf16>, vector<128x512xbf16>, vector<8x512xf32> -> vector<8x512xf32>
    %123 = arith.addf %120, %122 : vector<8x512xf32>
    %124 = vector.extract_strided_slice %123 {offsets = [0, 0], sizes = [8, 128], strides = [1, 1]} : vector<8x512xf32> to vector<8x128xf32>
    %125 = arith.negf %124 : vector<8x128xf32>
    %126 = math.exp %125 : vector<8x128xf32>
    %cst_36 = arith.constant 1.000000e+00 : f32
    %127 = vector.broadcast %cst_36 : f32 to vector<8x128xf32>
    %128 = arith.addf %127, %126 : vector<8x128xf32>
    %129 = arith.divf %127, %128 : vector<8x128xf32>
    %130 = vector.extract_strided_slice %123 {offsets = [0, 128], sizes = [8, 128], strides = [1, 1]} : vector<8x512xf32> to vector<8x128xf32>
    %131 = arith.negf %130 : vector<8x128xf32>
    %132 = math.exp %131 : vector<8x128xf32>
    %cst_37 = arith.constant 1.000000e+00 : f32
    %133 = vector.broadcast %cst_37 : f32 to vector<8x128xf32>
    %134 = arith.addf %133, %132 : vector<8x128xf32>
    %135 = arith.divf %133, %134 : vector<8x128xf32>
    %136 = vector.extract_strided_slice %123 {offsets = [0, 256], sizes = [8, 128], strides = [1, 1]} : vector<8x512xf32> to vector<8x128xf32>
    %137 = math.tanh %136 : vector<8x128xf32>
    %138 = vector.extract_strided_slice %123 {offsets = [0, 384], sizes = [8, 128], strides = [1, 1]} : vector<8x512xf32> to vector<8x128xf32>
    %139 = arith.negf %138 : vector<8x128xf32>
    %140 = math.exp %139 : vector<8x128xf32>
    %cst_38 = arith.constant 1.000000e+00 : f32
    %141 = vector.broadcast %cst_38 : f32 to vector<8x128xf32>
    %142 = arith.addf %141, %140 : vector<8x128xf32>
    %143 = arith.divf %141, %142 : vector<8x128xf32>
    %144 = arith.mulf %135, %104 : vector<8x128xf32>
    %145 = arith.mulf %129, %137 : vector<8x128xf32>
    %146 = arith.addf %144, %145 : vector<8x128xf32>
    %147 = math.tanh %146 : vector<8x128xf32>
    %148 = arith.mulf %143, %147 : vector<8x128xf32>
    %149 = vector.broadcast %118 : i32 to vector<8x1xi32>
    %150 = arith.cmpi slt, %149, %3 : vector<8x1xi32>
    %151 = arith.extui %150 : vector<8x1xi1> to vector<8x1xi32>
    %152 = arith.sitofp %151 : vector<8x1xi32> to vector<8x1xf32>
    %153 = vector.broadcast %152 : vector<8x1xf32> to vector<8x128xf32>
    %154 = arith.mulf %153, %146 : vector<8x128xf32>
    %cst_39 = arith.constant 1.000000e+00 : f32
    %155 = vector.broadcast %cst_39 : f32 to vector<8x1xf32>
    %156 = arith.subf %155, %152 : vector<8x1xf32>
    %157 = vector.broadcast %156 : vector<8x1xf32> to vector<8x128xf32>
    %158 = arith.mulf %157, %104 : vector<8x128xf32>
    %159 = arith.addf %154, %158 : vector<8x128xf32>
    %160 = vector.broadcast %152 : vector<8x1xf32> to vector<8x128xf32>
    %161 = arith.mulf %160, %148 : vector<8x128xf32>
    %cst_40 = arith.constant 1.000000e+00 : f32
    %162 = vector.broadcast %cst_40 : f32 to vector<8x1xf32>
    %163 = arith.subf %162, %152 : vector<8x1xf32>
    %164 = vector.broadcast %163 : vector<8x1xf32> to vector<8x128xf32>
    %165 = arith.mulf %164, %111 : vector<8x128xf32>
    %166 = arith.addf %161, %165 : vector<8x128xf32>
    %167 = vector.broadcast %152 : vector<8x1xf32> to vector<8x128xf32>
    %168 = arith.mulf %167, %148 : vector<8x128xf32>
    %c2_41 = arith.constant 2 : index
    %c0_42 = arith.constant 0 : index
    %c0_43 = arith.constant 0 : index
    %169 = vector.load %arg4[%c2_41, %c0_42, %c0_43] : memref<8x8x128xf32, #tpu.memory_space<vmem>>, vector<1x8x128xf32>
    %170 = vector.shape_cast %169 : vector<1x8x128xf32> to vector<8x128xf32>
    %171 = vector.shape_cast %168 : vector<8x128xf32> to vector<1x8x128xf32>
    tpu.vector_store %arg4[%c2_41, %c0_42, %c0_43], %171 {strides = array<i32>} : memref<8x8x128xf32, #tpu.memory_space<vmem>>, vector<1x8x128xf32>,
    %c8_i32_44 = arith.constant 8 : i32
    %172 = arith.muli %arg0, %c8_i32_44 : i32
    %c3_i32 = arith.constant 3 : i32
    %173 = arith.addi %172, %c3_i32 : i32
    %c3 = arith.constant 3 : index
    %c0_45 = arith.constant 0 : index
    %c0_46 = arith.constant 0 : index
    %174 = vector.load %arg1[%c3, %c0_45, %c0_46] : memref<8x8x512xf32, #tpu.memory_space<vmem>>, vector<1x8x512xf32>
    %175 = vector.shape_cast %174 : vector<1x8x512xf32> to vector<8x512xf32>
    %176 = arith.truncf %166 : vector<8x128xf32> to vector<8x128xbf16>
    %cst_47 = arith.constant dense<0.000000e+00> : vector<8x512xf32>
    %177 = tpu.matmul %176, %4, %cst_47 {dimension_numbers = #tpu.dot_dimension_numbers<[1], [0], [0], [1], [0, 0, 1, 1], [], []>} : vector<8x128xbf16>, vector<128x512xbf16>, vector<8x512xf32> -> vector<8x512xf32>
    %178 = arith.addf %175, %177 : vector<8x512xf32>
    %179 = vector.extract_strided_slice %178 {offsets = [0, 0], sizes = [8, 128], strides = [1, 1]} : vector<8x512xf32> to vector<8x128xf32>
    %180 = arith.negf %179 : vector<8x128xf32>
    %181 = math.exp %180 : vector<8x128xf32>
    %cst_48 = arith.constant 1.000000e+00 : f32
    %182 = vector.broadcast %cst_48 : f32 to vector<8x128xf32>
    %183 = arith.addf %182, %181 : vector<8x128xf32>
    %184 = arith.divf %182, %183 : vector<8x128xf32>
    %185 = vector.extract_strided_slice %178 {offsets = [0, 128], sizes = [8, 128], strides = [1, 1]} : vector<8x512xf32> to vector<8x128xf32>
    %186 = arith.negf %185 : vector<8x128xf32>
    %187 = math.exp %186 : vector<8x128xf32>
    %cst_49 = arith.constant 1.000000e+00 : f32
    %188 = vector.broadcast %cst_49 : f32 to vector<8x128xf32>
    %189 = arith.addf %188, %187 : vector<8x128xf32>
    %190 = arith.divf %188, %189 : vector<8x128xf32>
    %191 = vector.extract_strided_slice %178 {offsets = [0, 256], sizes = [8, 128], strides = [1, 1]} : vector<8x512xf32> to vector<8x128xf32>
    %192 = math.tanh %191 : vector<8x128xf32>
    %193 = vector.extract_strided_slice %178 {offsets = [0, 384], sizes = [8, 128], strides = [1, 1]} : vector<8x512xf32> to vector<8x128xf32>
    %194 = arith.negf %193 : vector<8x128xf32>
    %195 = math.exp %194 : vector<8x128xf32>
    %cst_50 = arith.constant 1.000000e+00 : f32
    %196 = vector.broadcast %cst_50 : f32 to vector<8x128xf32>
    %197 = arith.addf %196, %195 : vector<8x128xf32>
    %198 = arith.divf %196, %197 : vector<8x128xf32>
    %199 = arith.mulf %190, %159 : vector<8x128xf32>
    %200 = arith.mulf %184, %192 : vector<8x128xf32>
    %201 = arith.addf %199, %200 : vector<8x128xf32>
    %202 = math.tanh %201 : vector<8x128xf32>
    %203 = arith.mulf %198, %202 : vector<8x128xf32>
    %204 = vector.broadcast %173 : i32 to vector<8x1xi32>
    %205 = arith.cmpi slt, %204, %3 : vector<8x1xi32>
    %206 = arith.extui %205 : vector<8x1xi1> to vector<8x1xi32>
    %207 = arith.sitofp %206 : vector<8x1xi32> to vector<8x1xf32>
    %208 = vector.broadcast %207 : vector<8x1xf32> to vector<8x128xf32>
    %209 = arith.mulf %208, %201 : vector<8x128xf32>
    %cst_51 = arith.constant 1.000000e+00 : f32
    %210 = vector.broadcast %cst_51 : f32 to vector<8x1xf32>
    %211 = arith.subf %210, %207 : vector<8x1xf32>
    %212 = vector.broadcast %211 : vector<8x1xf32> to vector<8x128xf32>
    %213 = arith.mulf %212, %159 : vector<8x128xf32>
    %214 = arith.addf %209, %213 : vector<8x128xf32>
    %215 = vector.broadcast %207 : vector<8x1xf32> to vector<8x128xf32>
    %216 = arith.mulf %215, %203 : vector<8x128xf32>
    %cst_52 = arith.constant 1.000000e+00 : f32
    %217 = vector.broadcast %cst_52 : f32 to vector<8x1xf32>
    %218 = arith.subf %217, %207 : vector<8x1xf32>
    %219 = vector.broadcast %218 : vector<8x1xf32> to vector<8x128xf32>
    %220 = arith.mulf %219, %166 : vector<8x128xf32>
    %221 = arith.addf %216, %220 : vector<8x128xf32>
    %222 = vector.broadcast %207 : vector<8x1xf32> to vector<8x128xf32>
    %223 = arith.mulf %222, %203 : vector<8x128xf32>
    %c3_53 = arith.constant 3 : index
    %c0_54 = arith.constant 0 : index
    %c0_55 = arith.constant 0 : index
    %224 = vector.load %arg4[%c3_53, %c0_54, %c0_55] : memref<8x8x128xf32, #tpu.memory_space<vmem>>, vector<1x8x128xf32>
    %225 = vector.shape_cast %224 : vector<1x8x128xf32> to vector<8x128xf32>
    %226 = vector.shape_cast %223 : vector<8x128xf32> to vector<1x8x128xf32>
    tpu.vector_store %arg4[%c3_53, %c0_54, %c0_55], %226 {strides = array<i32>} : memref<8x8x128xf32, #tpu.memory_space<vmem>>, vector<1x8x128xf32>,
    %c8_i32_56 = arith.constant 8 : i32
    %227 = arith.muli %arg0, %c8_i32_56 : i32
    %c4_i32 = arith.constant 4 : i32
    %228 = arith.addi %227, %c4_i32 : i32
    %c4 = arith.constant 4 : index
    %c0_57 = arith.constant 0 : index
    %c0_58 = arith.constant 0 : index
    %229 = vector.load %arg1[%c4, %c0_57, %c0_58] : memref<8x8x512xf32, #tpu.memory_space<vmem>>, vector<1x8x512xf32>
    %230 = vector.shape_cast %229 : vector<1x8x512xf32> to vector<8x512xf32>
    %231 = arith.truncf %221 : vector<8x128xf32> to vector<8x128xbf16>
    %cst_59 = arith.constant dense<0.000000e+00> : vector<8x512xf32>
    %232 = tpu.matmul %231, %4, %cst_59 {dimension_numbers = #tpu.dot_dimension_numbers<[1], [0], [0], [1], [0, 0, 1, 1], [], []>} : vector<8x128xbf16>, vector<128x512xbf16>, vector<8x512xf32> -> vector<8x512xf32>
    %233 = arith.addf %230, %232 : vector<8x512xf32>
    %234 = vector.extract_strided_slice %233 {offsets = [0, 0], sizes = [8, 128], strides = [1, 1]} : vector<8x512xf32> to vector<8x128xf32>
    %235 = arith.negf %234 : vector<8x128xf32>
    %236 = math.exp %235 : vector<8x128xf32>
    %cst_60 = arith.constant 1.000000e+00 : f32
    %237 = vector.broadcast %cst_60 : f32 to vector<8x128xf32>
    %238 = arith.addf %237, %236 : vector<8x128xf32>
    %239 = arith.divf %237, %238 : vector<8x128xf32>
    %240 = vector.extract_strided_slice %233 {offsets = [0, 128], sizes = [8, 128], strides = [1, 1]} : vector<8x512xf32> to vector<8x128xf32>
    %241 = arith.negf %240 : vector<8x128xf32>
    %242 = math.exp %241 : vector<8x128xf32>
    %cst_61 = arith.constant 1.000000e+00 : f32
    %243 = vector.broadcast %cst_61 : f32 to vector<8x128xf32>
    %244 = arith.addf %243, %242 : vector<8x128xf32>
    %245 = arith.divf %243, %244 : vector<8x128xf32>
    %246 = vector.extract_strided_slice %233 {offsets = [0, 256], sizes = [8, 128], strides = [1, 1]} : vector<8x512xf32> to vector<8x128xf32>
    %247 = math.tanh %246 : vector<8x128xf32>
    %248 = vector.extract_strided_slice %233 {offsets = [0, 384], sizes = [8, 128], strides = [1, 1]} : vector<8x512xf32> to vector<8x128xf32>
    %249 = arith.negf %248 : vector<8x128xf32>
    %250 = math.exp %249 : vector<8x128xf32>
    %cst_62 = arith.constant 1.000000e+00 : f32
    %251 = vector.broadcast %cst_62 : f32 to vector<8x128xf32>
    %252 = arith.addf %251, %250 : vector<8x128xf32>
    %253 = arith.divf %251, %252 : vector<8x128xf32>
    %254 = arith.mulf %245, %214 : vector<8x128xf32>
    %255 = arith.mulf %239, %247 : vector<8x128xf32>
    %256 = arith.addf %254, %255 : vector<8x128xf32>
    %257 = math.tanh %256 : vector<8x128xf32>
    %258 = arith.mulf %253, %257 : vector<8x128xf32>
    %259 = vector.broadcast %228 : i32 to vector<8x1xi32>
    %260 = arith.cmpi slt, %259, %3 : vector<8x1xi32>
    %261 = arith.extui %260 : vector<8x1xi1> to vector<8x1xi32>
    %262 = arith.sitofp %261 : vector<8x1xi32> to vector<8x1xf32>
    %263 = vector.broadcast %262 : vector<8x1xf32> to vector<8x128xf32>
    %264 = arith.mulf %263, %256 : vector<8x128xf32>
    %cst_63 = arith.constant 1.000000e+00 : f32
    %265 = vector.broadcast %cst_63 : f32 to vector<8x1xf32>
    %266 = arith.subf %265, %262 : vector<8x1xf32>
    %267 = vector.broadcast %266 : vector<8x1xf32> to vector<8x128xf32>
    %268 = arith.mulf %267, %214 : vector<8x128xf32>
    %269 = arith.addf %264, %268 : vector<8x128xf32>
    %270 = vector.broadcast %262 : vector<8x1xf32> to vector<8x128xf32>
    %271 = arith.mulf %270, %258 : vector<8x128xf32>
    %cst_64 = arith.constant 1.000000e+00 : f32
    %272 = vector.broadcast %cst_64 : f32 to vector<8x1xf32>
    %273 = arith.subf %272, %262 : vector<8x1xf32>
    %274 = vector.broadcast %273 : vector<8x1xf32> to vector<8x128xf32>
    %275 = arith.mulf %274, %221 : vector<8x128xf32>
    %276 = arith.addf %271, %275 : vector<8x128xf32>
    %277 = vector.broadcast %262 : vector<8x1xf32> to vector<8x128xf32>
    %278 = arith.mulf %277, %258 : vector<8x128xf32>
    %c4_65 = arith.constant 4 : index
    %c0_66 = arith.constant 0 : index
    %c0_67 = arith.constant 0 : index
    %279 = vector.load %arg4[%c4_65, %c0_66, %c0_67] : memref<8x8x128xf32, #tpu.memory_space<vmem>>, vector<1x8x128xf32>
    %280 = vector.shape_cast %279 : vector<1x8x128xf32> to vector<8x128xf32>
    %281 = vector.shape_cast %278 : vector<8x128xf32> to vector<1x8x128xf32>
    tpu.vector_store %arg4[%c4_65, %c0_66, %c0_67], %281 {strides = array<i32>} : memref<8x8x128xf32, #tpu.memory_space<vmem>>, vector<1x8x128xf32>,
    %c8_i32_68 = arith.constant 8 : i32
    %282 = arith.muli %arg0, %c8_i32_68 : i32
    %c5_i32 = arith.constant 5 : i32
    %283 = arith.addi %282, %c5_i32 : i32
    %c5 = arith.constant 5 : index
    %c0_69 = arith.constant 0 : index
    %c0_70 = arith.constant 0 : index
    %284 = vector.load %arg1[%c5, %c0_69, %c0_70] : memref<8x8x512xf32, #tpu.memory_space<vmem>>, vector<1x8x512xf32>
    %285 = vector.shape_cast %284 : vector<1x8x512xf32> to vector<8x512xf32>
    %286 = arith.truncf %276 : vector<8x128xf32> to vector<8x128xbf16>
    %cst_71 = arith.constant dense<0.000000e+00> : vector<8x512xf32>
    %287 = tpu.matmul %286, %4, %cst_71 {dimension_numbers = #tpu.dot_dimension_numbers<[1], [0], [0], [1], [0, 0, 1, 1], [], []>} : vector<8x128xbf16>, vector<128x512xbf16>, vector<8x512xf32> -> vector<8x512xf32>
    %288 = arith.addf %285, %287 : vector<8x512xf32>
    %289 = vector.extract_strided_slice %288 {offsets = [0, 0], sizes = [8, 128], strides = [1, 1]} : vector<8x512xf32> to vector<8x128xf32>
    %290 = arith.negf %289 : vector<8x128xf32>
    %291 = math.exp %290 : vector<8x128xf32>
    %cst_72 = arith.constant 1.000000e+00 : f32
    %292 = vector.broadcast %cst_72 : f32 to vector<8x128xf32>
    %293 = arith.addf %292, %291 : vector<8x128xf32>
    %294 = arith.divf %292, %293 : vector<8x128xf32>
    %295 = vector.extract_strided_slice %288 {offsets = [0, 128], sizes = [8, 128], strides = [1, 1]} : vector<8x512xf32> to vector<8x128xf32>
    %296 = arith.negf %295 : vector<8x128xf32>
    %297 = math.exp %296 : vector<8x128xf32>
    %cst_73 = arith.constant 1.000000e+00 : f32
    %298 = vector.broadcast %cst_73 : f32 to vector<8x128xf32>
    %299 = arith.addf %298, %297 : vector<8x128xf32>
    %300 = arith.divf %298, %299 : vector<8x128xf32>
    %301 = vector.extract_strided_slice %288 {offsets = [0, 256], sizes = [8, 128], strides = [1, 1]} : vector<8x512xf32> to vector<8x128xf32>
    %302 = math.tanh %301 : vector<8x128xf32>
    %303 = vector.extract_strided_slice %288 {offsets = [0, 384], sizes = [8, 128], strides = [1, 1]} : vector<8x512xf32> to vector<8x128xf32>
    %304 = arith.negf %303 : vector<8x128xf32>
    %305 = math.exp %304 : vector<8x128xf32>
    %cst_74 = arith.constant 1.000000e+00 : f32
    %306 = vector.broadcast %cst_74 : f32 to vector<8x128xf32>
    %307 = arith.addf %306, %305 : vector<8x128xf32>
    %308 = arith.divf %306, %307 : vector<8x128xf32>
    %309 = arith.mulf %300, %269 : vector<8x128xf32>
    %310 = arith.mulf %294, %302 : vector<8x128xf32>
    %311 = arith.addf %309, %310 : vector<8x128xf32>
    %312 = math.tanh %311 : vector<8x128xf32>
    %313 = arith.mulf %308, %312 : vector<8x128xf32>
    %314 = vector.broadcast %283 : i32 to vector<8x1xi32>
    %315 = arith.cmpi slt, %314, %3 : vector<8x1xi32>
    %316 = arith.extui %315 : vector<8x1xi1> to vector<8x1xi32>
    %317 = arith.sitofp %316 : vector<8x1xi32> to vector<8x1xf32>
    %318 = vector.broadcast %317 : vector<8x1xf32> to vector<8x128xf32>
    %319 = arith.mulf %318, %311 : vector<8x128xf32>
    %cst_75 = arith.constant 1.000000e+00 : f32
    %320 = vector.broadcast %cst_75 : f32 to vector<8x1xf32>
    %321 = arith.subf %320, %317 : vector<8x1xf32>
    %322 = vector.broadcast %321 : vector<8x1xf32> to vector<8x128xf32>
    %323 = arith.mulf %322, %269 : vector<8x128xf32>
    %324 = arith.addf %319, %323 : vector<8x128xf32>
    %325 = vector.broadcast %317 : vector<8x1xf32> to vector<8x128xf32>
    %326 = arith.mulf %325, %313 : vector<8x128xf32>
    %cst_76 = arith.constant 1.000000e+00 : f32
    %327 = vector.broadcast %cst_76 : f32 to vector<8x1xf32>
    %328 = arith.subf %327, %317 : vector<8x1xf32>
    %329 = vector.broadcast %328 : vector<8x1xf32> to vector<8x128xf32>
    %330 = arith.mulf %329, %276 : vector<8x128xf32>
    %331 = arith.addf %326, %330 : vector<8x128xf32>
    %332 = vector.broadcast %317 : vector<8x1xf32> to vector<8x128xf32>
    %333 = arith.mulf %332, %313 : vector<8x128xf32>
    %c5_77 = arith.constant 5 : index
    %c0_78 = arith.constant 0 : index
    %c0_79 = arith.constant 0 : index
    %334 = vector.load %arg4[%c5_77, %c0_78, %c0_79] : memref<8x8x128xf32, #tpu.memory_space<vmem>>, vector<1x8x128xf32>
    %335 = vector.shape_cast %334 : vector<1x8x128xf32> to vector<8x128xf32>
    %336 = vector.shape_cast %333 : vector<8x128xf32> to vector<1x8x128xf32>
    tpu.vector_store %arg4[%c5_77, %c0_78, %c0_79], %336 {strides = array<i32>} : memref<8x8x128xf32, #tpu.memory_space<vmem>>, vector<1x8x128xf32>,
    %c8_i32_80 = arith.constant 8 : i32
    %337 = arith.muli %arg0, %c8_i32_80 : i32
    %c6_i32 = arith.constant 6 : i32
    %338 = arith.addi %337, %c6_i32 : i32
    %c6 = arith.constant 6 : index
    %c0_81 = arith.constant 0 : index
    %c0_82 = arith.constant 0 : index
    %339 = vector.load %arg1[%c6, %c0_81, %c0_82] : memref<8x8x512xf32, #tpu.memory_space<vmem>>, vector<1x8x512xf32>
    %340 = vector.shape_cast %339 : vector<1x8x512xf32> to vector<8x512xf32>
    %341 = arith.truncf %331 : vector<8x128xf32> to vector<8x128xbf16>
    %cst_83 = arith.constant dense<0.000000e+00> : vector<8x512xf32>
    %342 = tpu.matmul %341, %4, %cst_83 {dimension_numbers = #tpu.dot_dimension_numbers<[1], [0], [0], [1], [0, 0, 1, 1], [], []>} : vector<8x128xbf16>, vector<128x512xbf16>, vector<8x512xf32> -> vector<8x512xf32>
    %343 = arith.addf %340, %342 : vector<8x512xf32>
    %344 = vector.extract_strided_slice %343 {offsets = [0, 0], sizes = [8, 128], strides = [1, 1]} : vector<8x512xf32> to vector<8x128xf32>
    %345 = arith.negf %344 : vector<8x128xf32>
    %346 = math.exp %345 : vector<8x128xf32>
    %cst_84 = arith.constant 1.000000e+00 : f32
    %347 = vector.broadcast %cst_84 : f32 to vector<8x128xf32>
    %348 = arith.addf %347, %346 : vector<8x128xf32>
    %349 = arith.divf %347, %348 : vector<8x128xf32>
    %350 = vector.extract_strided_slice %343 {offsets = [0, 128], sizes = [8, 128], strides = [1, 1]} : vector<8x512xf32> to vector<8x128xf32>
    %351 = arith.negf %350 : vector<8x128xf32>
    %352 = math.exp %351 : vector<8x128xf32>
    %cst_85 = arith.constant 1.000000e+00 : f32
    %353 = vector.broadcast %cst_85 : f32 to vector<8x128xf32>
    %354 = arith.addf %353, %352 : vector<8x128xf32>
    %355 = arith.divf %353, %354 : vector<8x128xf32>
    %356 = vector.extract_strided_slice %343 {offsets = [0, 256], sizes = [8, 128], strides = [1, 1]} : vector<8x512xf32> to vector<8x128xf32>
    %357 = math.tanh %356 : vector<8x128xf32>
    %358 = vector.extract_strided_slice %343 {offsets = [0, 384], sizes = [8, 128], strides = [1, 1]} : vector<8x512xf32> to vector<8x128xf32>
    %359 = arith.negf %358 : vector<8x128xf32>
    %360 = math.exp %359 : vector<8x128xf32>
    %cst_86 = arith.constant 1.000000e+00 : f32
    %361 = vector.broadcast %cst_86 : f32 to vector<8x128xf32>
    %362 = arith.addf %361, %360 : vector<8x128xf32>
    %363 = arith.divf %361, %362 : vector<8x128xf32>
    %364 = arith.mulf %355, %324 : vector<8x128xf32>
    %365 = arith.mulf %349, %357 : vector<8x128xf32>
    %366 = arith.addf %364, %365 : vector<8x128xf32>
    %367 = math.tanh %366 : vector<8x128xf32>
    %368 = arith.mulf %363, %367 : vector<8x128xf32>
    %369 = vector.broadcast %338 : i32 to vector<8x1xi32>
    %370 = arith.cmpi slt, %369, %3 : vector<8x1xi32>
    %371 = arith.extui %370 : vector<8x1xi1> to vector<8x1xi32>
    %372 = arith.sitofp %371 : vector<8x1xi32> to vector<8x1xf32>
    %373 = vector.broadcast %372 : vector<8x1xf32> to vector<8x128xf32>
    %374 = arith.mulf %373, %366 : vector<8x128xf32>
    %cst_87 = arith.constant 1.000000e+00 : f32
    %375 = vector.broadcast %cst_87 : f32 to vector<8x1xf32>
    %376 = arith.subf %375, %372 : vector<8x1xf32>
    %377 = vector.broadcast %376 : vector<8x1xf32> to vector<8x128xf32>
    %378 = arith.mulf %377, %324 : vector<8x128xf32>
    %379 = arith.addf %374, %378 : vector<8x128xf32>
    %380 = vector.broadcast %372 : vector<8x1xf32> to vector<8x128xf32>
    %381 = arith.mulf %380, %368 : vector<8x128xf32>
    %cst_88 = arith.constant 1.000000e+00 : f32
    %382 = vector.broadcast %cst_88 : f32 to vector<8x1xf32>
    %383 = arith.subf %382, %372 : vector<8x1xf32>
    %384 = vector.broadcast %383 : vector<8x1xf32> to vector<8x128xf32>
    %385 = arith.mulf %384, %331 : vector<8x128xf32>
    %386 = arith.addf %381, %385 : vector<8x128xf32>
    %387 = vector.broadcast %372 : vector<8x1xf32> to vector<8x128xf32>
    %388 = arith.mulf %387, %368 : vector<8x128xf32>
    %c6_89 = arith.constant 6 : index
    %c0_90 = arith.constant 0 : index
    %c0_91 = arith.constant 0 : index
    %389 = vector.load %arg4[%c6_89, %c0_90, %c0_91] : memref<8x8x128xf32, #tpu.memory_space<vmem>>, vector<1x8x128xf32>
    %390 = vector.shape_cast %389 : vector<1x8x128xf32> to vector<8x128xf32>
    %391 = vector.shape_cast %388 : vector<8x128xf32> to vector<1x8x128xf32>
    tpu.vector_store %arg4[%c6_89, %c0_90, %c0_91], %391 {strides = array<i32>} : memref<8x8x128xf32, #tpu.memory_space<vmem>>, vector<1x8x128xf32>,
    %c8_i32_92 = arith.constant 8 : i32
    %392 = arith.muli %arg0, %c8_i32_92 : i32
    %c7_i32 = arith.constant 7 : i32
    %393 = arith.addi %392, %c7_i32 : i32
    %c7 = arith.constant 7 : index
    %c0_93 = arith.constant 0 : index
    %c0_94 = arith.constant 0 : index
    %394 = vector.load %arg1[%c7, %c0_93, %c0_94] : memref<8x8x512xf32, #tpu.memory_space<vmem>>, vector<1x8x512xf32>
    %395 = vector.shape_cast %394 : vector<1x8x512xf32> to vector<8x512xf32>
    %396 = arith.truncf %386 : vector<8x128xf32> to vector<8x128xbf16>
    %cst_95 = arith.constant dense<0.000000e+00> : vector<8x512xf32>
    %397 = tpu.matmul %396, %4, %cst_95 {dimension_numbers = #tpu.dot_dimension_numbers<[1], [0], [0], [1], [0, 0, 1, 1], [], []>} : vector<8x128xbf16>, vector<128x512xbf16>, vector<8x512xf32> -> vector<8x512xf32>
    %398 = arith.addf %395, %397 : vector<8x512xf32>
    %399 = vector.extract_strided_slice %398 {offsets = [0, 0], sizes = [8, 128], strides = [1, 1]} : vector<8x512xf32> to vector<8x128xf32>
    %400 = arith.negf %399 : vector<8x128xf32>
    %401 = math.exp %400 : vector<8x128xf32>
    %cst_96 = arith.constant 1.000000e+00 : f32
    %402 = vector.broadcast %cst_96 : f32 to vector<8x128xf32>
    %403 = arith.addf %402, %401 : vector<8x128xf32>
    %404 = arith.divf %402, %403 : vector<8x128xf32>
    %405 = vector.extract_strided_slice %398 {offsets = [0, 128], sizes = [8, 128], strides = [1, 1]} : vector<8x512xf32> to vector<8x128xf32>
    %406 = arith.negf %405 : vector<8x128xf32>
    %407 = math.exp %406 : vector<8x128xf32>
    %cst_97 = arith.constant 1.000000e+00 : f32
    %408 = vector.broadcast %cst_97 : f32 to vector<8x128xf32>
    %409 = arith.addf %408, %407 : vector<8x128xf32>
    %410 = arith.divf %408, %409 : vector<8x128xf32>
    %411 = vector.extract_strided_slice %398 {offsets = [0, 256], sizes = [8, 128], strides = [1, 1]} : vector<8x512xf32> to vector<8x128xf32>
    %412 = math.tanh %411 : vector<8x128xf32>
    %413 = vector.extract_strided_slice %398 {offsets = [0, 384], sizes = [8, 128], strides = [1, 1]} : vector<8x512xf32> to vector<8x128xf32>
    %414 = arith.negf %413 : vector<8x128xf32>
    %415 = math.exp %414 : vector<8x128xf32>
    %cst_98 = arith.constant 1.000000e+00 : f32
    %416 = vector.broadcast %cst_98 : f32 to vector<8x128xf32>
    %417 = arith.addf %416, %415 : vector<8x128xf32>
    %418 = arith.divf %416, %417 : vector<8x128xf32>
    %419 = arith.mulf %410, %379 : vector<8x128xf32>
    %420 = arith.mulf %404, %412 : vector<8x128xf32>
    %421 = arith.addf %419, %420 : vector<8x128xf32>
    %422 = math.tanh %421 : vector<8x128xf32>
    %423 = arith.mulf %418, %422 : vector<8x128xf32>
    %424 = vector.broadcast %393 : i32 to vector<8x1xi32>
    %425 = arith.cmpi slt, %424, %3 : vector<8x1xi32>
    %426 = arith.extui %425 : vector<8x1xi1> to vector<8x1xi32>
    %427 = arith.sitofp %426 : vector<8x1xi32> to vector<8x1xf32>
    %428 = vector.broadcast %427 : vector<8x1xf32> to vector<8x128xf32>
    %429 = arith.mulf %428, %421 : vector<8x128xf32>
    %cst_99 = arith.constant 1.000000e+00 : f32
    %430 = vector.broadcast %cst_99 : f32 to vector<8x1xf32>
    %431 = arith.subf %430, %427 : vector<8x1xf32>
    %432 = vector.broadcast %431 : vector<8x1xf32> to vector<8x128xf32>
    %433 = arith.mulf %432, %379 : vector<8x128xf32>
    %434 = arith.addf %429, %433 : vector<8x128xf32>
    %435 = vector.broadcast %427 : vector<8x1xf32> to vector<8x128xf32>
    %436 = arith.mulf %435, %423 : vector<8x128xf32>
    %cst_100 = arith.constant 1.000000e+00 : f32
    %437 = vector.broadcast %cst_100 : f32 to vector<8x1xf32>
    %438 = arith.subf %437, %427 : vector<8x1xf32>
    %439 = vector.broadcast %438 : vector<8x1xf32> to vector<8x128xf32>
    %440 = arith.mulf %439, %386 : vector<8x128xf32>
    %441 = arith.addf %436, %440 : vector<8x128xf32>
    %442 = vector.broadcast %427 : vector<8x1xf32> to vector<8x128xf32>
    %443 = arith.mulf %442, %423 : vector<8x128xf32>
    %c7_101 = arith.constant 7 : index
    %c0_102 = arith.constant 0 : index
    %c0_103 = arith.constant 0 : index
    %444 = vector.load %arg4[%c7_101, %c0_102, %c0_103] : memref<8x8x128xf32, #tpu.memory_space<vmem>>, vector<1x8x128xf32>
    %445 = vector.shape_cast %444 : vector<1x8x128xf32> to vector<8x128xf32>
    %446 = vector.shape_cast %443 : vector<8x128xf32> to vector<1x8x128xf32>
    tpu.vector_store %arg4[%c7_101, %c0_102, %c0_103], %446 {strides = array<i32>} : memref<8x8x128xf32, #tpu.memory_space<vmem>>, vector<1x8x128xf32>,
    %c0_104 = arith.constant 0 : index
    %c0_105 = arith.constant 0 : index
    %447 = vector.load %arg5[%c0_104, %c0_105] : memref<8x128xf32, #tpu.memory_space<vmem>>, vector<8x128xf32>
    tpu.vector_store %arg5[%c0_104, %c0_105], %441 {strides = array<i32>} : memref<8x128xf32, #tpu.memory_space<vmem>>, vector<8x128xf32>,
    %c0_106 = arith.constant 0 : index
    %c0_107 = arith.constant 0 : index
    %448 = vector.load %arg6[%c0_106, %c0_107] : memref<8x128xf32, #tpu.memory_space<vmem>>, vector<8x128xf32>
    tpu.vector_store %arg6[%c0_106, %c0_107], %434 {strides = array<i32>} : memref<8x128xf32, #tpu.memory_space<vmem>>, vector<8x128xf32>,
    return
  }
  func.func @transform_0(%arg0: i32) -> (i32, i32, i32) {
    %c0_i32 = arith.constant 0 : i32
    %c0_i32_0 = arith.constant 0 : i32
    %c0_i32_1 = arith.constant 0 : i32
    return %arg0, %c0_i32, %c0_i32_0 : i32, i32, i32
  }
  func.func @transform_1(%arg0: i32) -> (i32, i32) {
    %c0_i32 = arith.constant 0 : i32
    %c0_i32_0 = arith.constant 0 : i32
    %c0_i32_1 = arith.constant 0 : i32
    return %c0_i32, %c0_i32_0 : i32, i32
  }
  func.func @transform_2(%arg0: i32) -> (i32, i32) {
    %c0_i32 = arith.constant 0 : i32
    %c0_i32_0 = arith.constant 0 : i32
    %c0_i32_1 = arith.constant 0 : i32
    return %c0_i32, %c0_i32_0 : i32, i32
  }
  func.func @transform_3(%arg0: i32) -> (i32, i32, i32) {
    %c0_i32 = arith.constant 0 : i32
    %c0_i32_0 = arith.constant 0 : i32
    %c0_i32_1 = arith.constant 0 : i32
    return %arg0, %c0_i32, %c0_i32_0 : i32, i32, i32
  }
}

</mosaic_0001>

<llo_original>
// kernel: tpu_custom_call.1
$region0: #{tpu_custom_call.1}
  #allocation0 [shape = 'u32[]', space=smem, size = 0x4, offset = 0x4, fixed_abs, tag = 'smem constant byte address 0x4 - core index']
  #allocation1 [shape = 'u32[144,128]{1,0:T(1,128)}', space=vmem, size = 0x12000, scoped, tag = 'internal scratch']
  #allocation2 [shape = 'f32[8,128]{1,0:T(8,128)}', space=vmem, size = 0x1000, scoped, tag = 'scratch operand']
  #allocation3 [shape = 'f32[8,128]{1,0:T(8,128)}', space=vmem, size = 0x1000, scoped, tag = 'scratch operand']
  %s0 = inlined_call_operand.hbm [shape: f32[8,8,512], index: 0, kind: input, shape index: {}]
  %s1 = inlined_call_operand.hbm [shape: bf16[128,512], index: 1, kind: input, shape index: {}]
  %s2 = inlined_call_operand.vmem [shape: s32[8,1], index: 2, kind: input, shape index: {}]
  %s3 = inlined_call_operand.hbm [shape: f32[8,8,128], index: 3, kind: output, shape index: {}]
  %s4 = sld [smem:[#allocation0]]
  $region34: #{tpu_custom_call.1} parent=0
    _
  %s6 = ssub.s32 1, %s4
  %s7 = scalar_select 0, %s6, %s4
  $region1: #{tpu_custom_call.1} parent=0
    #allocation4 [shape = 'u8[131072]{0}', space=vmem, size = 0x20000, scoped, tag = 'input window, operand 0, single buffered']
    #allocation5 [shape = 's32[1]{0}', space=sflag, size = 0x4, scoped, tag = 'scoped memory for tpu_custom_call.1']
    #allocation6 [shape = 's32[1]{0}', space=sflag, size = 0x4, scoped, tag = 'scoped memory for tpu_custom_call.1']
    #allocation7 [shape = 'u8[131072]{0}', space=vmem, size = 0x20000, scoped, tag = 'input window, operand 1, single buffered']
    #allocation8 [shape = 's32[1]{0}', space=sflag, size = 0x4, scoped, tag = 'scoped memory for tpu_custom_call.1']
    #allocation9 [shape = 'u8[32768]{0}', space=vmem, size = 0x8000, scoped, tag = 'output window, operand 0, single buffered']
    %8 = vsyncpa [#allocation5], 0
    %9 = vsyncpa [#allocation8], 0
    %10 = vsyncpa [#allocation6], 0
    // Predicated region
    $region2: #{tpu_custom_call.1} parent=1 // pred_check
      _
    $region3: #{tpu_custom_call.1} parent=1 // pred_check_branch
      %12 = sbr.rel (0) target = $region5
    $region4: #{tpu_custom_call.1} parent=1 // pred_region
      %s14 = ssub.s32 4096, 4096
      %15 = vsyncadd [#allocation5], %s14
      %s16 = sshll.u32 [#allocation4], 4
      %s17 = int_to_ptr.vmem [resolvable:$true] %s16
      %22 = dma.hbm_to_vmem [thread:$0]  %s0, 4096, %s17, [#allocation5], 512, 512, 32
    $region5: #{tpu_custom_call.1} parent=1 // pred_fallthru
      _
    // Predicated region
    $region6: #{tpu_custom_call.1} parent=1 // pred_check
      _
    $region7: #{tpu_custom_call.1} parent=1 // pred_check_branch
      %24 = sbr.rel (0) target = $region9
    $region8: #{tpu_custom_call.1} parent=1 // pred_region
      %s26 = ssub.s32 4096, 4096
      %27 = vsyncadd [#allocation8], %s26
      %s28 = sshll.u32 [#allocation7], 4
      %s29 = int_to_ptr.vmem [resolvable:$true] %s28
      %34 = dma.hbm_to_vmem [thread:$0]  %s1, 4096, %s29, [#allocation8], 256, 256, 16
    $region9: #{tpu_custom_call.1} parent=1 // pred_fallthru
      _
    // Predicated region
    $region10: #{tpu_custom_call.1} parent=1 // pred_check
      _
    $region11: #{tpu_custom_call.1} parent=1 // pred_check_branch
      %36 = sbr.rel (0) target = $region13
    $region12: #{tpu_custom_call.1} parent=1 // pred_region
      _
    $region13: #{tpu_custom_call.1} parent=1 // pred_fallthru
      _
    // Predicated region
    $region14: #{tpu_custom_call.1} parent=1 // pred_check
      _
    $region15: #{tpu_custom_call.1} parent=1 // pred_check_branch
      %38 = sbr.rel (0) target = $region17
    $region16: #{tpu_custom_call.1} parent=1 // pred_region
      %39 = dma.done [#allocation5], 4096
    $region17: #{tpu_custom_call.1} parent=1 // pred_fallthru
      _
    // Predicated region
    $region18: #{tpu_custom_call.1} parent=1 // pred_check
      _
    $region19: #{tpu_custom_call.1} parent=1 // pred_check_branch
      %41 = sbr.rel (0) target = $region21
    $region20: #{tpu_custom_call.1} parent=1 // pred_region
      %42 = dma.done [#allocation8], 4096
    $region21: #{tpu_custom_call.1} parent=1 // pred_fallthru
      _
    %p44 = scmp.eq.s32.totalorder 0, 0
    // Predicated region
    $region22: #{tpu_custom_call.1} parent=1 // pred_check
      %p45 = pneg %p44
    $region23: #{tpu_custom_call.1} parent=1 // pred_check_branch
      %47 = sbr.rel (%p45) target = $region25
    $region24: #{tpu_custom_call.1} parent=1 // pred_region
      %48 = vst [vmem:[#allocation2] sm:$0xff] 0.0
      %49 = vst [vmem:[#allocation3] sm:$0xff] 0.0
    $region25: #{tpu_custom_call.1} parent=1 // pred_fallthru
      _
    %v50 = vld [vmem:[%s2] sm:$0xff]
    %v51 = vld [vmem:[#allocation7] sm:$0xff]
    %v52 = vld [vmem:[#allocation7 + $0x8] sm:$0xff]
    %v53 = vld [vmem:[#allocation7 + $0x10] sm:$0xff]
    %v54 = vld [vmem:[#allocation7 + $0x18] sm:$0xff]
    %v55 = vld [vmem:[#allocation7 + $0x20] sm:$0xff]
    %v56 = vld [vmem:[#allocation7 + $0x28] sm:$0xff]
    %v57 = vld [vmem:[#allocation7 + $0x30] sm:$0xff]
    %v58 = vld [vmem:[#allocation7 + $0x38] sm:$0xff]
    %v59 = vld [vmem:[#allocation7 + $0x40] sm:$0xff]
    %v60 = vld [vmem:[#allocation7 + $0x48] sm:$0xff]
    %v61 = vld [vmem:[#allocation7 + $0x50] sm:$0xff]
    %v62 = vld [vmem:[#allocation7 + $0x58] sm:$0xff]
    %v63 = vld [vmem:[#allocation7 + $0x60] sm:$0xff]
    %v64 = vld [vmem:[#allocation7 + $0x68] sm:$0xff]
    %v65 = vld [vmem:[#allocation7 + $0x70] sm:$0xff]
    %v66 = vld [vmem:[#allocation7 + $0x78] sm:$0xff]
    %v67 = vld [vmem:[#allocation7 + $0x80] sm:$0xff]
    %v68 = vld [vmem:[#allocation7 + $0x88] sm:$0xff]
    %v69 = vld [vmem:[#allocation7 + $0x90] sm:$0xff]
    %v70 = vld [vmem:[#allocation7 + $0x98] sm:$0xff]
    %v71 = vld [vmem:[#allocation7 + $0xa0] sm:$0xff]
    %v72 = vld [vmem:[#allocation7 + $0xa8] sm:$0xff]
    %v73 = vld [vmem:[#allocation7 + $0xb0] sm:$0xff]
    %v74 = vld [vmem:[#allocation7 + $0xb8] sm:$0xff]
    %v75 = vld [vmem:[#allocation7 + $0xc0] sm:$0xff]
    %v76 = vld [vmem:[#allocation7 + $0xc8] sm:$0xff]
    %v77 = vld [vmem:[#allocation7 + $0xd0] sm:$0xff]
    %v78 = vld [vmem:[#allocation7 + $0xd8] sm:$0xff]
    %v79 = vld [vmem:[#allocation7 + $0xe0] sm:$0xff]
    %v80 = vld [vmem:[#allocation7 + $0xe8] sm:$0xff]
    %v81 = vld [vmem:[#allocation7 + $0xf0] sm:$0xff]
    %v82 = vld [vmem:[#allocation7 + $0xf8] sm:$0xff]
    %v83 = vld [vmem:[#allocation2] sm:$0xff]
    %v84 = vld [vmem:[#allocation3] sm:$0xff]
    %s85 = smul.u32 0, 8
    %v86 = vld [vmem:[#allocation4] sm:$0xff]
    %v87 = vld [vmem:[#allocation4 + $0x8] sm:$0xff]
    %v88 = vld [vmem:[#allocation4 + $0x10] sm:$0xff]
    %v89 = vld [vmem:[#allocation4 + $0x18] sm:$0xff]
    %v90 = vpack.c.bf16 %v83, %v83
    %v123 = vunpack.c.l.b16 %v51
    %v124 = vunpack.c.h.b16 %v51
    %v125 = vunpack.c.l.b16 %v52
    %v126 = vunpack.c.h.b16 %v52
    %v127 = vunpack.c.l.b16 %v53
    %v128 = vunpack.c.h.b16 %v53
    %v129 = vunpack.c.l.b16 %v54
    %v130 = vunpack.c.h.b16 %v54
    %v131 = vunpack.c.l.b16 %v55
    %v132 = vunpack.c.h.b16 %v55
    %v133 = vunpack.c.l.b16 %v56
    %v134 = vunpack.c.h.b16 %v56
    %v135 = vunpack.c.l.b16 %v57
    %v136 = vunpack.c.h.b16 %v57
    %v137 = vunpack.c.l.b16 %v58
    %v138 = vunpack.c.h.b16 %v58
    %v139 = vunpack.c.l.b16 %v59
    %v140 = vunpack.c.h.b16 %v59
    %v141 = vunpack.c.l.b16 %v60
    %v142 = vunpack.c.h.b16 %v60
    %v143 = vunpack.c.l.b16 %v61
    %v144 = vunpack.c.h.b16 %v61
    %v145 = vunpack.c.l.b16 %v62
    %v146 = vunpack.c.h.b16 %v62
    %v147 = vunpack.c.l.b16 %v63
    %v148 = vunpack.c.h.b16 %v63
    %v149 = vunpack.c.l.b16 %v64
    %v150 = vunpack.c.h.b16 %v64
    %v151 = vunpack.c.l.b16 %v65
    %v152 = vunpack.c.h.b16 %v65
    %v153 = vunpack.c.l.b16 %v66
    %v154 = vunpack.c.h.b16 %v66
    %v155 = vunpack.c.l.b16 %v67
    %v156 = vunpack.c.h.b16 %v67
    %v157 = vunpack.c.l.b16 %v68
    %v158 = vunpack.c.h.b16 %v68
    %v159 = vunpack.c.l.b16 %v69
    %v160 = vunpack.c.h.b16 %v69
    %v161 = vunpack.c.l.b16 %v70
    %v162 = vunpack.c.h.b16 %v70
    %v163 = vunpack.c.l.b16 %v71
    %v164 = vunpack.c.h.b16 %v71
    %v165 = vunpack.c.l.b16 %v72
    %v166 = vunpack.c.h.b16 %v72
    %v167 = vunpack.c.l.b16 %v73
    %v168 = vunpack.c.h.b16 %v73
    %v169 = vunpack.c.l.b16 %v74
    %v170 = vunpack.c.h.b16 %v74
    %v171 = vunpack.c.l.b16 %v75
    %v172 = vunpack.c.h.b16 %v75
    %v173 = vunpack.c.l.b16 %v76
    %v174 = vunpack.c.h.b16 %v76
    %v175 = vunpack.c.l.b16 %v77
    %v176 = vunpack.c.h.b16 %v77
    %v177 = vunpack.c.l.b16 %v78
    %v178 = vunpack.c.h.b16 %v78
    %v179 = vunpack.c.l.b16 %v79
    %v180 = vunpack.c.h.b16 %v79
    %v181 = vunpack.c.l.b16 %v80
    %v182 = vunpack.c.h.b16 %v80
    %v183 = vunpack.c.l.b16 %v81
    %v184 = vunpack.c.h.b16 %v81
    %v185 = vunpack.c.l.b16 %v82
    %v186 = vunpack.c.h.b16 %v82
    %v187 = vpack.c.b16 %v127, %v123
    %v188 = vpack.c.b16 %v128, %v124
    %v189 = vpack.c.b16 %v129, %v125
    %v190 = vpack.c.b16 %v130, %v126
    %v191 = vpack.c.b16 %v135, %v131
    %v192 = vpack.c.b16 %v136, %v132
    %v193 = vpack.c.b16 %v137, %v133
    %v194 = vpack.c.b16 %v138, %v134
    %v195 = vpack.c.b16 %v143, %v139
    %v196 = vpack.c.b16 %v144, %v140
    %v197 = vpack.c.b16 %v145, %v141
    %v198 = vpack.c.b16 %v146, %v142
    %v199 = vpack.c.b16 %v151, %v147
    %v200 = vpack.c.b16 %v152, %v148
    %v201 = vpack.c.b16 %v153, %v149
    %v202 = vpack.c.b16 %v154, %v150
    %v203 = vpack.c.b16 %v159, %v155
    %v204 = vpack.c.b16 %v160, %v156
    %v205 = vpack.c.b16 %v161, %v157
    %v206 = vpack.c.b16 %v162, %v158
    %v207 = vpack.c.b16 %v167, %v163
    %v208 = vpack.c.b16 %v168, %v164
    %v209 = vpack.c.b16 %v169, %v165
    %v210 = vpack.c.b16 %v170, %v166
    %v211 = vpack.c.b16 %v175, %v171
    %v212 = vpack.c.b16 %v176, %v172
    %v213 = vpack.c.b16 %v177, %v173
    %v214 = vpack.c.b16 %v178, %v174
    %v215 = vpack.c.b16 %v183, %v179
    %v216 = vpack.c.b16 %v184, %v180
    %v217 = vpack.c.b16 %v185, %v181
    %v218 = vpack.c.b16 %v186, %v182
    %251 = vmatprep.subr.bf16.mxu0 %v216
    %252 = vmatpush1.bf16.msra.mxu0 %v215
    %253 = vmatprep.subr.bf16.mxu0 %v212
    %254 = vmatpush1.bf16.msra.mxu0 %v211
    %255 = vmatprep.subr.bf16.mxu0 %v208
    %256 = vmatpush1.bf16.msra.mxu0 %v207
    %257 = vmatprep.subr.bf16.mxu0 %v204
    %258 = vmatpush1.bf16.msra.mxu0 %v203
    %259 = vmatprep.subr.bf16.mxu0 %v200
    %260 = vmatpush1.bf16.msra.mxu0 %v199
    %261 = vmatprep.subr.bf16.mxu0 %v196
    %262 = vmatpush1.bf16.msra.mxu0 %v195
    %263 = vmatprep.subr.bf16.mxu0 %v192
    %264 = vmatpush1.bf16.msra.mxu0 %v191
    %265 = vmatprep.subr.bf16.mxu0 %v188
    %266 = vmatpush1.bf16.msra.mxu0 %v187
    %267 = vmatprep.subr.bf16.mxu0 0
    %268 = vmatpush2.bf16.msra.mxu0 0
    %269 = vmatprep.subr.bf16.mxu0 0
    %270 = vmatpush2.bf16.msra.mxu0 0
    %271 = vmatprep.subr.bf16.mxu0 0
    %272 = vmatpush2.bf16.msra.mxu0 0
    %273 = vmatprep.subr.bf16.mxu0 0
    %274 = vmatpush2.bf16.msra.mxu0 0
    %275 = vmatprep.subr.bf16.mxu0 0
    %276 = vmatpush2.bf16.msra.mxu0 0
    %277 = vmatprep.subr.bf16.mxu0 0
    %278 = vmatpush2.bf16.msra.mxu0 0
    %279 = vmatprep.subr.bf16.mxu0 0
    %280 = vmatpush2.bf16.msra.mxu0 0
    %281 = vmatprep.subr.bf16.mxu0 0
    %282 = vmatpush2.bf16.msra.mxu0 0
    %283 = vmatprep.mubr.bf16.mxu0 0
    %284 = vmatmul.mubr.bf16.gmra.mxu0 %v90
    %v285 = vpop.f32.mrf.mxu0
    %v286 = vadd.f32 0.0, %v285
    %v287 = vpop.f32.mrf.mxu0
    %v288 = vadd.f32 0.0, %v287
    %v289 = vpop.f32.mrf.mxu0
    %v290 = vpop.f32.mrf.mxu0
    %291 = vdwg.mxu0
    %292 = vmatprep.subr.bf16.mxu0 %v218
    %293 = vmatpush1.bf16.msra.mxu0 %v217
    %294 = vmatprep.subr.bf16.mxu0 %v214
    %295 = vmatpush1.bf16.msra.mxu0 %v213
    %296 = vmatprep.subr.bf16.mxu0 %v210
    %297 = vmatpush1.bf16.msra.mxu0 %v209
    %298 = vmatprep.subr.bf16.mxu0 %v206
    %299 = vmatpush1.bf16.msra.mxu0 %v205
    %300 = vmatprep.subr.bf16.mxu0 %v202
    %301 = vmatpush1.bf16.msra.mxu0 %v201
    %302 = vmatprep.subr.bf16.mxu0 %v198
    %303 = vmatpush1.bf16.msra.mxu0 %v197
    %304 = vmatprep.subr.bf16.mxu0 %v194
    %305 = vmatpush1.bf16.msra.mxu0 %v193
    %306 = vmatprep.subr.bf16.mxu0 %v190
    %307 = vmatpush1.bf16.msra.mxu0 %v189
    %308 = vmatprep.subr.bf16.mxu0 0
    %309 = vmatpush2.bf16.msra.mxu0 0
    %310 = vmatprep.subr.bf16.mxu0 0
    %311 = vmatpush2.bf16.msra.mxu0 0
    %312 = vmatprep.subr.bf16.mxu0 0
    %313 = vmatpush2.bf16.msra.mxu0 0
    %314 = vmatprep.subr.bf16.mxu0 0
    %315 = vmatpush2.bf16.msra.mxu0 0
    %316 = vmatprep.subr.bf16.mxu0 0
    %317 = vmatpush2.bf16.msra.mxu0 0
    %318 = vmatprep.subr.bf16.mxu0 0
    %319 = vmatpush2.bf16.msra.mxu0 0
    %320 = vmatprep.subr.bf16.mxu0 0
    %321 = vmatpush2.bf16.msra.mxu0 0
    %322 = vmatprep.subr.bf16.mxu0 0
    %323 = vmatpush2.bf16.msra.mxu0 0
    %324 = vmatprep.mubr.bf16.mxu0 0
    %325 = vmatmul.mubr.bf16.gmra.mxu0 %v90
    %v326 = vpop.f32.mrf.mxu0
    %v327 = vadd.f32 0.0, %v326
    %v328 = vpop.f32.mrf.mxu0
    %v329 = vadd.f32 0.0, %v328
    %v330 = vpop.f32.mrf.mxu0
    %v331 = vpop.f32.mrf.mxu0
    %332 = vdwg.mxu0
    %v333 = vadd.f32 %v86, %v286
    %v334 = vadd.f32 %v87, %v288
    %v335 = vadd.f32 %v88, %v327
    %v336 = vadd.f32 %v89, %v329
    %v337 = vxor.u32 %v333, 2147483648
    %v338 = vmul.f32 %v337, 1.442695
    %v339 = vpow.pop %v338
    %v340 = vadd.f32 %v339, 1.0
    %v341 = vrcp.pop %v340
    %v342 = vmul.f32 1.0, %v341
    %v343 = vxor.u32 %v334, 2147483648
    %v344 = vmul.f32 %v343, 1.442695
    %v345 = vpow.pop %v344
    %v346 = vadd.f32 %v345, 1.0
    %v347 = vrcp.pop %v346
    %v348 = vmul.f32 1.0, %v347
    %v349 = vtanh.pop %v335
    %v350 = vxor.u32 %v336, 2147483648
    %v351 = vmul.f32 %v350, 1.442695
    %v352 = vpow.pop %v351
    %v353 = vadd.f32 %v352, 1.0
    %v354 = vrcp.pop %v353
    %v355 = vmul.f32 1.0, %v354
    %v356 = vmul.f32 %v348, %v84
    %v357 = vmul.f32 %v342, %v349
    %v358 = vadd.f32 %v356, %v357
    %v359 = vtanh.pop %v358
    %v360 = vmul.f32 %v355, %v359
    %v361 = vstv %s85
    %vm362 = vcmp.lt.s32.totalorder %v361, %v50
    %v363 = vsel %vm362, 1, 0
    %v364 = vcvt.s32.f32 %v363
    %366 = vset.pattern.permute.xlu0 0
    %367 = vperm.xlu0 %366, %v364
    %v368 = vpop.permute.xlu0 %367
    %v370 = vmul.f32 %v368, %v358
    %v371 = vsub.f32 1.0, %v364
    %373 = vset.pattern.permute.xlu0 0
    %374 = vperm.xlu0 %373, %v371
    %v375 = vpop.permute.xlu0 %374
    %v377 = vmul.f32 %v375, %v84
    %v378 = vadd.f32 %v370, %v377
    %v379 = vmul.f32 %v368, %v360
    %v380 = vmul.f32 %v375, %v83
    %v381 = vadd.f32 %v379, %v380
    %382 = vst [vmem:[#allocation9] sm:$0xff] %v379
    %s383 = sadd.s32 %s85, 1
    %s384 = scalar_lea.vmem [#allocation4], 32
    %v385 = vld [vmem:[%s384] sm:$0xff]
    %v386 = vld [vmem:[%s384 + $0x8] sm:$0xff]
    %v387 = vld [vmem:[%s384 + $0x10] sm:$0xff]
    %v388 = vld [vmem:[%s384 + $0x18] sm:$0xff]
    %v389 = vpack.c.bf16 %v381, %v381
    %390 = vmatprep.subr.bf16.mxu0 %v216
    %391 = vmatpush1.bf16.msra.mxu0 %v215
    %392 = vmatprep.subr.bf16.mxu0 %v212
    %393 = vmatpush1.bf16.msra.mxu0 %v211
    %394 = vmatprep.subr.bf16.mxu0 %v208
    %395 = vmatpush1.bf16.msra.mxu0 %v207
    %396 = vmatprep.subr.bf16.mxu0 %v204
    %397 = vmatpush1.bf16.msra.mxu0 %v203
    %398 = vmatprep.subr.bf16.mxu0 %v200
    %399 = vmatpush1.bf16.msra.mxu0 %v199
    %400 = vmatprep.subr.bf16.mxu0 %v196
    %401 = vmatpush1.bf16.msra.mxu0 %v195
    %402 = vmatprep.subr.bf16.mxu0 %v192
    %403 = vmatpush1.bf16.msra.mxu0 %v191
    %404 = vmatprep.subr.bf16.mxu0 %v188
    %405 = vmatpush1.bf16.msra.mxu0 %v187
    %406 = vmatprep.subr.bf16.mxu0 0
    %407 = vmatpush2.bf16.msra.mxu0 0
    %408 = vmatprep.subr.bf16.mxu0 0
    %409 = vmatpush2.bf16.msra.mxu0 0
    %410 = vmatprep.subr.bf16.mxu0 0
    %411 = vmatpush2.bf16.msra.mxu0 0
    %412 = vmatprep.subr.bf16.mxu0 0
    %413 = vmatpush2.bf16.msra.mxu0 0
    %414 = vmatprep.subr.bf16.mxu0 0
    %415 = vmatpush2.bf16.msra.mxu0 0
    %416 = vmatprep.subr.bf16.mxu0 0
    %417 = vmatpush2.bf16.msra.mxu0 0
    %418 = vmatprep.subr.bf16.mxu0 0
    %419 = vmatpush2.bf16.msra.mxu0 0
    %420 = vmatprep.subr.bf16.mxu0 0
    %421 = vmatpush2.bf16.msra.mxu0 0
    %422 = vmatprep.mubr.bf16.mxu0 0
    %423 = vmatmul.mubr.bf16.gmra.mxu0 %v389
    %v424 = vpop.f32.mrf.mxu0
    %v425 = vadd.f32 0.0, %v424
    %v426 = vpop.f32.mrf.mxu0
    %v427 = vadd.f32 0.0, %v426
    %v428 = vpop.f32.mrf.mxu0
    %v429 = vpop.f32.mrf.mxu0
    %430 = vdwg.mxu0
    %431 = vmatprep.subr.bf16.mxu0 %v218
    %432 = vmatpush1.bf16.msra.mxu0 %v217
    %433 = vmatprep.subr.bf16.mxu0 %v214
    %434 = vmatpush1.bf16.msra.mxu0 %v213
    %435 = vmatprep.subr.bf16.mxu0 %v210
    %436 = vmatpush1.bf16.msra.mxu0 %v209
    %437 = vmatprep.subr.bf16.mxu0 %v206
    %438 = vmatpush1.bf16.msra.mxu0 %v205
    %439 = vmatprep.subr.bf16.mxu0 %v202
    %440 = vmatpush1.bf16.msra.mxu0 %v201
    %441 = vmatprep.subr.bf16.mxu0 %v198
    %442 = vmatpush1.bf16.msra.mxu0 %v197
    %443 = vmatprep.subr.bf16.mxu0 %v194
    %444 = vmatpush1.bf16.msra.mxu0 %v193
    %445 = vmatprep.subr.bf16.mxu0 %v190
    %446 = vmatpush1.bf16.msra.mxu0 %v189
    %447 = vmatprep.subr.bf16.mxu0 0
    %448 = vmatpush2.bf16.msra.mxu0 0
    %449 = vmatprep.subr.bf16.mxu0 0
    %450 = vmatpush2.bf16.msra.mxu0 0
    %451 = vmatprep.subr.bf16.mxu0 0
    %452 = vmatpush2.bf16.msra.mxu0 0
    %453 = vmatprep.subr.bf16.mxu0 0
    %454 = vmatpush2.bf16.msra.mxu0 0
    %455 = vmatprep.subr.bf16.mxu0 0
    %456 = vmatpush2.bf16.msra.mxu0 0
    %457 = vmatprep.subr.bf16.mxu0 0
    %458 = vmatpush2.bf16.msra.mxu0 0
    %459 = vmatprep.subr.bf16.mxu0 0
    %460 = vmatpush2.bf16.msra.mxu0 0
    %461 = vmatprep.subr.bf16.mxu0 0
    %462 = vmatpush2.bf16.msra.mxu0 0
    %463 = vmatprep.mubr.bf16.mxu0 0
    %464 = vmatmul.mubr.bf16.gmra.mxu0 %v389
    %v465 = vpop.f32.mrf.mxu0
    %v466 = vadd.f32 0.0, %v465
    %v467 = vpop.f32.mrf.mxu0
    %v468 = vadd.f32 0.0, %v467
    %v469 = vpop.f32.mrf.mxu0
    %v470 = vpop.f32.mrf.mxu0
    %471 = vdwg.mxu0
    %v472 = vadd.f32 %v385, %v425
    %v473 = vadd.f32 %v386, %v427
    %v474 = vadd.f32 %v387, %v466
    %v475 = vadd.f32 %v388, %v468
    %v476 = vxor.u32 %v472, 2147483648
    %v477 = vmul.f32 %v476, 1.442695
    %v478 = vpow.pop %v477
    %v479 = vadd.f32 %v478, 1.0
    %v480 = vrcp.pop %v479
    %v481 = vmul.f32 1.0, %v480
    %v482 = vxor.u32 %v473, 2147483648
    %v483 = vmul.f32 %v482, 1.442695
    %v484 = vpow.pop %v483
    %v485 = vadd.f32 %v484, 1.0
    %v486 = vrcp.pop %v485
    %v487 = vmul.f32 1.0, %v486
    %v488 = vtanh.pop %v474
    %v489 = vxor.u32 %v475, 2147483648
    %v490 = vmul.f32 %v489, 1.442695
    %v491 = vpow.pop %v490
    %v492 = vadd.f32 %v491, 1.0
    %v493 = vrcp.pop %v492
    %v494 = vmul.f32 1.0, %v493
    %v495 = vmul.f32 %v487, %v378
    %v496 = vmul.f32 %v481, %v488
    %v497 = vadd.f32 %v495, %v496
    %v498 = vtanh.pop %v497
    %v499 = vmul.f32 %v494, %v498
    %v500 = vstv %s383
    %vm501 = vcmp.lt.s32.totalorder %v500, %v50
    %v502 = vsel %vm501, 1, 0
    %v503 = vcvt.s32.f32 %v502
    %505 = vset.pattern.permute.xlu0 0
    %506 = vperm.xlu0 %505, %v503
    %v507 = vpop.permute.xlu0 %506
    %v509 = vmul.f32 %v507, %v497
    %v510 = vsub.f32 1.0, %v503
    %512 = vset.pattern.permute.xlu0 0
    %513 = vperm.xlu0 %512, %v510
    %v514 = vpop.permute.xlu0 %513
    %v516 = vmul.f32 %v514, %v378
    %v517 = vadd.f32 %v509, %v516
    %v518 = vmul.f32 %v507, %v499
    %v519 = vmul.f32 %v514, %v381
    %v520 = vadd.f32 %v518, %v519
    %s521 = scalar_lea.vmem [#allocation9], 8
    %522 = vst [vmem:[%s521] sm:$0xff] %v518
    %s523 = sadd.s32 %s85, 2
    %s524 = scalar_lea.vmem [#allocation4], 64
    %v525 = vld [vmem:[%s524] sm:$0xff]
    %v526 = vld [vmem:[%s524 + $0x8] sm:$0xff]
    %v527 = vld [vmem:[%s524 + $0x10] sm:$0xff]
    %v528 = vld [vmem:[%s524 + $0x18] sm:$0xff]
    %v529 = vpack.c.bf16 %v520, %v520
    %530 = vmatprep.subr.bf16.mxu0 %v216
    %531 = vmatpush1.bf16.msra.mxu0 %v215
    %532 = vmatprep.subr.bf16.mxu0 %v212
    %533 = vmatpush1.bf16.msra.mxu0 %v211
    %534 = vmatprep.subr.bf16.mxu0 %v208
    %535 = vmatpush1.bf16.msra.mxu0 %v207
    %536 = vmatprep.subr.bf16.mxu0 %v204
    %537 = vmatpush1.bf16.msra.mxu0 %v203
    %538 = vmatprep.subr.bf16.mxu0 %v200
    %539 = vmatpush1.bf16.msra.mxu0 %v199
    %540 = vmatprep.subr.bf16.mxu0 %v196
    %541 = vmatpush1.bf16.msra.mxu0 %v195
    %542 = vmatprep.subr.bf16.mxu0 %v192
    %543 = vmatpush1.bf16.msra.mxu0 %v191
    %544 = vmatprep.subr.bf16.mxu0 %v188
    %545 = vmatpush1.bf16.msra.mxu0 %v187
    %546 = vmatprep.subr.bf16.mxu0 0
    %547 = vmatpush2.bf16.msra.mxu0 0
    %548 = vmatprep.subr.bf16.mxu0 0
    %549 = vmatpush2.bf16.msra.mxu0 0
    %550 = vmatprep.subr.bf16.mxu0 0
    %551 = vmatpush2.bf16.msra.mxu0 0
    %552 = vmatprep.subr.bf16.mxu0 0
    %553 = vmatpush2.bf16.msra.mxu0 0
    %554 = vmatprep.subr.bf16.mxu0 0
    %555 = vmatpush2.bf16.msra.mxu0 0
    %556 = vmatprep.subr.bf16.mxu0 0
    %557 = vmatpush2.bf16.msra.mxu0 0
    %558 = vmatprep.subr.bf16.mxu0 0
    %559 = vmatpush2.bf16.msra.mxu0 0
    %560 = vmatprep.subr.bf16.mxu0 0
    %561 = vmatpush2.bf16.msra.mxu0 0
    %562 = vmatprep.mubr.bf16.mxu0 0
    %563 = vmatmul.mubr.bf16.gmra.mxu0 %v529
    %v564 = vpop.f32.mrf.mxu0
    %v565 = vadd.f32 0.0, %v564
    %v566 = vpop.f32.mrf.mxu0
    %v567 = vadd.f32 0.0, %v566
    %v568 = vpop.f32.mrf.mxu0
    %v569 = vpop.f32.mrf.mxu0
    %570 = vdwg.mxu0
    %571 = vmatprep.subr.bf16.mxu0 %v218
    %572 = vmatpush1.bf16.msra.mxu0 %v217
    %573 = vmatprep.subr.bf16.mxu0 %v214
    %574 = vmatpush1.bf16.msra.mxu0 %v213
    %575 = vmatprep.subr.bf16.mxu0 %v210
    %576 = vmatpush1.bf16.msra.mxu0 %v209
    %577 = vmatprep.subr.bf16.mxu0 %v206
    %578 = vmatpush1.bf16.msra.mxu0 %v205
    %579 = vmatprep.subr.bf16.mxu0 %v202
    %580 = vmatpush1.bf16.msra.mxu0 %v201
    %581 = vmatprep.subr.bf16.mxu0 %v198
    %582 = vmatpush1.bf16.msra.mxu0 %v197
    %583 = vmatprep.subr.bf16.mxu0 %v194
    %584 = vmatpush1.bf16.msra.mxu0 %v193
    %585 = vmatprep.subr.bf16.mxu0 %v190
    %586 = vmatpush1.bf16.msra.mxu0 %v189
    %587 = vmatprep.subr.bf16.mxu0 0
    %588 = vmatpush2.bf16.msra.mxu0 0
    %589 = vmatprep.subr.bf16.mxu0 0
    %590 = vmatpush2.bf16.msra.mxu0 0
    %591 = vmatprep.subr.bf16.mxu0 0
    %592 = vmatpush2.bf16.msra.mxu0 0
    %593 = vmatprep.subr.bf16.mxu0 0
    %594 = vmatpush2.bf16.msra.mxu0 0
    %595 = vmatprep.subr.bf16.mxu0 0
    %596 = vmatpush2.bf16.msra.mxu0 0
    %597 = vmatprep.subr.bf16.mxu0 0
    %598 = vmatpush2.bf16.msra.mxu0 0
    %599 = vmatprep.subr.bf16.mxu0 0
    %600 = vmatpush2.bf16.msra.mxu0 0
    %601 = vmatprep.subr.bf16.mxu0 0
    %602 = vmatpush2.bf16.msra.mxu0 0
    %603 = vmatprep.mubr.bf16.mxu0 0
    %604 = vmatmul.mubr.bf16.gmra.mxu0 %v529
    %v605 = vpop.f32.mrf.mxu0
    %v606 = vadd.f32 0.0, %v605
    %v607 = vpop.f32.mrf.mxu0
    %v608 = vadd.f32 0.0, %v607
    %v609 = vpop.f32.mrf.mxu0
    %v610 = vpop.f32.mrf.mxu0
    %611 = vdwg.mxu0
    %v612 = vadd.f32 %v525, %v565
    %v613 = vadd.f32 %v526, %v567
    %v614 = vadd.f32 %v527, %v606
    %v615 = vadd.f32 %v528, %v608
    %v616 = vxor.u32 %v612, 2147483648
    %v617 = vmul.f32 %v616, 1.442695
    %v618 = vpow.pop %v617
    %v619 = vadd.f32 %v618, 1.0
    %v620 = vrcp.pop %v619
    %v621 = vmul.f32 1.0, %v620
    %v622 = vxor.u32 %v613, 2147483648
    %v623 = vmul.f32 %v622, 1.442695
    %v624 = vpow.pop %v623
    %v625 = vadd.f32 %v624, 1.0
    %v626 = vrcp.pop %v625
    %v627 = vmul.f32 1.0, %v626
    %v628 = vtanh.pop %v614
    %v629 = vxor.u32 %v615, 2147483648
    %v630 = vmul.f32 %v629, 1.442695
    %v631 = vpow.pop %v630
    %v632 = vadd.f32 %v631, 1.0
    %v633 = vrcp.pop %v632
    %v634 = vmul.f32 1.0, %v633
    %v635 = vmul.f32 %v627, %v517
    %v636 = vmul.f32 %v621, %v628
    %v637 = vadd.f32 %v635, %v636
    %v638 = vtanh.pop %v637
    %v639 = vmul.f32 %v634, %v638
    %v640 = vstv %s523
    %vm641 = vcmp.lt.s32.totalorder %v640, %v50
    %v642 = vsel %vm641, 1, 0
    %v643 = vcvt.s32.f32 %v642
    %645 = vset.pattern.permute.xlu0 0
    %646 = vperm.xlu0 %645, %v643
    %v647 = vpop.permute.xlu0 %646
    %v649 = vmul.f32 %v647, %v637
    %v650 = vsub.f32 1.0, %v643
    %652 = vset.pattern.permute.xlu0 0
    %653 = vperm.xlu0 %652, %v650
    %v654 = vpop.permute.xlu0 %653
    %v656 = vmul.f32 %v654, %v517
    %v657 = vadd.f32 %v649, %v656
    %v658 = vmul.f32 %v647, %v639
    %v659 = vmul.f32 %v654, %v520
    %v660 = vadd.f32 %v658, %v659
    %s661 = scalar_lea.vmem [#allocation9], 16
    %662 = vst [vmem:[%s661] sm:$0xff] %v658
    %s663 = sadd.s32 %s85, 3
    %s664 = scalar_lea.vmem [#allocation4], 96
    %v665 = vld [vmem:[%s664] sm:$0xff]
    %v666 = vld [vmem:[%s664 + $0x8] sm:$0xff]
    %v667 = vld [vmem:[%s664 + $0x10] sm:$0xff]
    %v668 = vld [vmem:[%s664 + $0x18] sm:$0xff]
    %v669 = vpack.c.bf16 %v660, %v660
    %670 = vmatprep.subr.bf16.mxu0 %v216
    %671 = vmatpush1.bf16.msra.mxu0 %v215
    %672 = vmatprep.subr.bf16.mxu0 %v212
    %673 = vmatpush1.bf16.msra.mxu0 %v211
    %674 = vmatprep.subr.bf16.mxu0 %v208
    %675 = vmatpush1.bf16.msra.mxu0 %v207
    %676 = vmatprep.subr.bf16.mxu0 %v204
    %677 = vmatpush1.bf16.msra.mxu0 %v203
    %678 = vmatprep.subr.bf16.mxu0 %v200
    %679 = vmatpush1.bf16.msra.mxu0 %v199
    %680 = vmatprep.subr.bf16.mxu0 %v196
    %681 = vmatpush1.bf16.msra.mxu0 %v195
    %682 = vmatprep.subr.bf16.mxu0 %v192
    %683 = vmatpush1.bf16.msra.mxu0 %v191
    %684 = vmatprep.subr.bf16.mxu0 %v188
    %685 = vmatpush1.bf16.msra.mxu0 %v187
    %686 = vmatprep.subr.bf16.mxu0 0
    %687 = vmatpush2.bf16.msra.mxu0 0
    %688 = vmatprep.subr.bf16.mxu0 0
    %689 = vmatpush2.bf16.msra.mxu0 0
    %690 = vmatprep.subr.bf16.mxu0 0
    %691 = vmatpush2.bf16.msra.mxu0 0
    %692 = vmatprep.subr.bf16.mxu0 0
    %693 = vmatpush2.bf16.msra.mxu0 0
    %694 = vmatprep.subr.bf16.mxu0 0
    %695 = vmatpush2.bf16.msra.mxu0 0
    %696 = vmatprep.subr.bf16.mxu0 0
    %697 = vmatpush2.bf16.msra.mxu0 0
    %698 = vmatprep.subr.bf16.mxu0 0
    %699 = vmatpush2.bf16.msra.mxu0 0
    %700 = vmatprep.subr.bf16.mxu0 0
    %701 = vmatpush2.bf16.msra.mxu0 0
    %702 = vmatprep.mubr.bf16.mxu0 0
    %703 = vmatmul.mubr.bf16.gmra.mxu0 %v669
    %v704 = vpop.f32.mrf.mxu0
    %v705 = vadd.f32 0.0, %v704
    %v706 = vpop.f32.mrf.mxu0
    %v707 = vadd.f32 0.0, %v706
    %v708 = vpop.f32.mrf.mxu0
    %v709 = vpop.f32.mrf.mxu0
    %710 = vdwg.mxu0
    %711 = vmatprep.subr.bf16.mxu0 %v218
    %712 = vmatpush1.bf16.msra.mxu0 %v217
    %713 = vmatprep.subr.bf16.mxu0 %v214
    %714 = vmatpush1.bf16.msra.mxu0 %v213
    %715 = vmatprep.subr.bf16.mxu0 %v210
    %716 = vmatpush1.bf16.msra.mxu0 %v209
    %717 = vmatprep.subr.bf16.mxu0 %v206
    %718 = vmatpush1.bf16.msra.mxu0 %v205
    %719 = vmatprep.subr.bf16.mxu0 %v202
    %720 = vmatpush1.bf16.msra.mxu0 %v201
    %721 = vmatprep.subr.bf16.mxu0 %v198
    %722 = vmatpush1.bf16.msra.mxu0 %v197
    %723 = vmatprep.subr.bf16.mxu0 %v194
    %724 = vmatpush1.bf16.msra.mxu0 %v193
    %725 = vmatprep.subr.bf16.mxu0 %v190
    %726 = vmatpush1.bf16.msra.mxu0 %v189
    %727 = vmatprep.subr.bf16.mxu0 0
    %728 = vmatpush2.bf16.msra.mxu0 0
    %729 = vmatprep.subr.bf16.mxu0 0
    %730 = vmatpush2.bf16.msra.mxu0 0
    %731 = vmatprep.subr.bf16.mxu0 0
    %732 = vmatpush2.bf16.msra.mxu0 0
    %733 = vmatprep.subr.bf16.mxu0 0
    %734 = vmatpush2.bf16.msra.mxu0 0
    %735 = vmatprep.subr.bf16.mxu0 0
    %736 = vmatpush2.bf16.msra.mxu0 0
    %737 = vmatprep.subr.bf16.mxu0 0
    %738 = vmatpush2.bf16.msra.mxu0 0
    %739 = vmatprep.subr.bf16.mxu0 0
    %740 = vmatpush2.bf16.msra.mxu0 0
    %741 = vmatprep.subr.bf16.mxu0 0
    %742 = vmatpush2.bf16.msra.mxu0 0
    %743 = vmatprep.mubr.bf16.mxu0 0
    %744 = vmatmul.mubr.bf16.gmra.mxu0 %v669
    %v745 = vpop.f32.mrf.mxu0
    %v746 = vadd.f32 0.0, %v745
    %v747 = vpop.f32.mrf.mxu0
    %v748 = vadd.f32 0.0, %v747
    %v749 = vpop.f32.mrf.mxu0
    %v750 = vpop.f32.mrf.mxu0
    %751 = vdwg.mxu0
    %v752 = vadd.f32 %v665, %v705
    %v753 = vadd.f32 %v666, %v707
    %v754 = vadd.f32 %v667, %v746
    %v755 = vadd.f32 %v668, %v748
    %v756 = vxor.u32 %v752, 2147483648
    %v757 = vmul.f32 %v756, 1.442695
    %v758 = vpow.pop %v757
    %v759 = vadd.f32 %v758, 1.0
    %v760 = vrcp.pop %v759
    %v761 = vmul.f32 1.0, %v760
    %v762 = vxor.u32 %v753, 2147483648
    %v763 = vmul.f32 %v762, 1.442695
    %v764 = vpow.pop %v763
    %v765 = vadd.f32 %v764, 1.0
    %v766 = vrcp.pop %v765
    %v767 = vmul.f32 1.0, %v766
    %v768 = vtanh.pop %v754
    %v769 = vxor.u32 %v755, 2147483648
    %v770 = vmul.f32 %v769, 1.442695
    %v771 = vpow.pop %v770
    %v772 = vadd.f32 %v771, 1.0
    %v773 = vrcp.pop %v772
    %v774 = vmul.f32 1.0, %v773
    %v775 = vmul.f32 %v767, %v657
    %v776 = vmul.f32 %v761, %v768
    %v777 = vadd.f32 %v775, %v776
    %v778 = vtanh.pop %v777
    %v779 = vmul.f32 %v774, %v778
    %v780 = vstv %s663
    %vm781 = vcmp.lt.s32.totalorder %v780, %v50
    %v782 = vsel %vm781, 1, 0
    %v783 = vcvt.s32.f32 %v782
    %785 = vset.pattern.permute.xlu0 0
    %786 = vperm.xlu0 %785, %v783
    %v787 = vpop.permute.xlu0 %786
    %v789 = vmul.f32 %v787, %v777
    %v790 = vsub.f32 1.0, %v783
    %792 = vset.pattern.permute.xlu0 0
    %793 = vperm.xlu0 %792, %v790
    %v794 = vpop.permute.xlu0 %793
    %v796 = vmul.f32 %v794, %v657
    %v797 = vadd.f32 %v789, %v796
    %v798 = vmul.f32 %v787, %v779
    %v799 = vmul.f32 %v794, %v660
    %v800 = vadd.f32 %v798, %v799
    %s801 = scalar_lea.vmem [#allocation9], 24
    %802 = vst [vmem:[%s801] sm:$0xff] %v798
    %s803 = sadd.s32 %s85, 4
    %s804 = scalar_lea.vmem [#allocation4], 128
    %v805 = vld [vmem:[%s804] sm:$0xff]
    %v806 = vld [vmem:[%s804 + $0x8] sm:$0xff]
    %v807 = vld [vmem:[%s804 + $0x10] sm:$0xff]
    %v808 = vld [vmem:[%s804 + $0x18] sm:$0xff]
    %v809 = vpack.c.bf16 %v800, %v800
    %810 = vmatprep.subr.bf16.mxu0 %v216
    %811 = vmatpush1.bf16.msra.mxu0 %v215
    %812 = vmatprep.subr.bf16.mxu0 %v212
    %813 = vmatpush1.bf16.msra.mxu0 %v211
    %814 = vmatprep.subr.bf16.mxu0 %v208
    %815 = vmatpush1.bf16.msra.mxu0 %v207
    %816 = vmatprep.subr.bf16.mxu0 %v204
    %817 = vmatpush1.bf16.msra.mxu0 %v203
    %818 = vmatprep.subr.bf16.mxu0 %v200
    %819 = vmatpush1.bf16.msra.mxu0 %v199
    %820 = vmatprep.subr.bf16.mxu0 %v196
    %821 = vmatpush1.bf16.msra.mxu0 %v195
    %822 = vmatprep.subr.bf16.mxu0 %v192
    %823 = vmatpush1.bf16.msra.mxu0 %v191
    %824 = vmatprep.subr.bf16.mxu0 %v188
    %825 = vmatpush1.bf16.msra.mxu0 %v187
    %826 = vmatprep.subr.bf16.mxu0 0
    %827 = vmatpush2.bf16.msra.mxu0 0
    %828 = vmatprep.subr.bf16.mxu0 0
    %829 = vmatpush2.bf16.msra.mxu0 0
    %830 = vmatprep.subr.bf16.mxu0 0
    %831 = vmatpush2.bf16.msra.mxu0 0
    %832 = vmatprep.subr.bf16.mxu0 0
    %833 = vmatpush2.bf16.msra.mxu0 0
    %834 = vmatprep.subr.bf16.mxu0 0
    %835 = vmatpush2.bf16.msra.mxu0 0
    %836 = vmatprep.subr.bf16.mxu0 0
    %837 = vmatpush2.bf16.msra.mxu0 0
    %838 = vmatprep.subr.bf16.mxu0 0
    %839 = vmatpush2.bf16.msra.mxu0 0
    %840 = vmatprep.subr.bf16.mxu0 0
    %841 = vmatpush2.bf16.msra.mxu0 0
    %842 = vmatprep.mubr.bf16.mxu0 0
    %843 = vmatmul.mubr.bf16.gmra.mxu0 %v809
    %v844 = vpop.f32.mrf.mxu0
    %v845 = vadd.f32 0.0, %v844
    %v846 = vpop.f32.mrf.mxu0
    %v847 = vadd.f32 0.0, %v846
    %v848 = vpop.f32.mrf.mxu0
    %v849 = vpop.f32.mrf.mxu0
    %850 = vdwg.mxu0
    %851 = vmatprep.subr.bf16.mxu0 %v218
    %852 = vmatpush1.bf16.msra.mxu0 %v217
    %853 = vmatprep.subr.bf16.mxu0 %v214
    %854 = vmatpush1.bf16.msra.mxu0 %v213
    %855 = vmatprep.subr.bf16.mxu0 %v210
    %856 = vmatpush1.bf16.msra.mxu0 %v209
    %857 = vmatprep.subr.bf16.mxu0 %v206
    %858 = vmatpush1.bf16.msra.mxu0 %v205
    %859 = vmatprep.subr.bf16.mxu0 %v202
    %860 = vmatpush1.bf16.msra.mxu0 %v201
    %861 = vmatprep.subr.bf16.mxu0 %v198
    %862 = vmatpush1.bf16.msra.mxu0 %v197
    %863 = vmatprep.subr.bf16.mxu0 %v194
    %864 = vmatpush1.bf16.msra.mxu0 %v193
    %865 = vmatprep.subr.bf16.mxu0 %v190
    %866 = vmatpush1.bf16.msra.mxu0 %v189
    %867 = vmatprep.subr.bf16.mxu0 0
    %868 = vmatpush2.bf16.msra.mxu0 0
    %869 = vmatprep.subr.bf16.mxu0 0
    %870 = vmatpush2.bf16.msra.mxu0 0
    %871 = vmatprep.subr.bf16.mxu0 0
    %872 = vmatpush2.bf16.msra.mxu0 0
    %873 = vmatprep.subr.bf16.mxu0 0
    %874 = vmatpush2.bf16.msra.mxu0 0
    %875 = vmatprep.subr.bf16.mxu0 0
    %876 = vmatpush2.bf16.msra.mxu0 0
    %877 = vmatprep.subr.bf16.mxu0 0
    %878 = vmatpush2.bf16.msra.mxu0 0
    %879 = vmatprep.subr.bf16.mxu0 0
    %880 = vmatpush2.bf16.msra.mxu0 0
    %881 = vmatprep.subr.bf16.mxu0 0
    %882 = vmatpush2.bf16.msra.mxu0 0
    %883 = vmatprep.mubr.bf16.mxu0 0
    %884 = vmatmul.mubr.bf16.gmra.mxu0 %v809
    %v885 = vpop.f32.mrf.mxu0
    %v886 = vadd.f32 0.0, %v885
    %v887 = vpop.f32.mrf.mxu0
    %v888 = vadd.f32 0.0, %v887
    %v889 = vpop.f32.mrf.mxu0
    %v890 = vpop.f32.mrf.mxu0
    %891 = vdwg.mxu0
    %v892 = vadd.f32 %v805, %v845
    %v893 = vadd.f32 %v806, %v847
    %v894 = vadd.f32 %v807, %v886
    %v895 = vadd.f32 %v808, %v888
    %v896 = vxor.u32 %v892, 2147483648
    %v897 = vmul.f32 %v896, 1.442695
    %v898 = vpow.pop %v897
    %v899 = vadd.f32 %v898, 1.0
    %v900 = vrcp.pop %v899
    %v901 = vmul.f32 1.0, %v900
    %v902 = vxor.u32 %v893, 2147483648
    %v903 = vmul.f32 %v902, 1.442695
    %v904 = vpow.pop %v903
    %v905 = vadd.f32 %v904, 1.0
    %v906 = vrcp.pop %v905
    %v907 = vmul.f32 1.0, %v906
    %v908 = vtanh.pop %v894
    %v909 = vxor.u32 %v895, 2147483648
    %v910 = vmul.f32 %v909, 1.442695
    %v911 = vpow.pop %v910
    %v912 = vadd.f32 %v911, 1.0
    %v913 = vrcp.pop %v912
    %v914 = vmul.f32 1.0, %v913
    %v915 = vmul.f32 %v907, %v797
    %v916 = vmul.f32 %v901, %v908
    %v917 = vadd.f32 %v915, %v916
    %v918 = vtanh.pop %v917
    %v919 = vmul.f32 %v914, %v918
    %v920 = vstv %s803
    %vm921 = vcmp.lt.s32.totalorder %v920, %v50
    %v922 = vsel %vm921, 1, 0
    %v923 = vcvt.s32.f32 %v922
    %925 = vset.pattern.permute.xlu0 0
    %926 = vperm.xlu0 %925, %v923
    %v927 = vpop.permute.xlu0 %926
    %v929 = vmul.f32 %v927, %v917
    %v930 = vsub.f32 1.0, %v923
    %932 = vset.pattern.permute.xlu0 0
    %933 = vperm.xlu0 %932, %v930
    %v934 = vpop.permute.xlu0 %933
    %v936 = vmul.f32 %v934, %v797
    %v937 = vadd.f32 %v929, %v936
    %v938 = vmul.f32 %v927, %v919
    %v939 = vmul.f32 %v934, %v800
    %v940 = vadd.f32 %v938, %v939
    %s941 = scalar_lea.vmem [#allocation9], 32
    %942 = vst [vmem:[%s941] sm:$0xff] %v938
    %s943 = sadd.s32 %s85, 5
    %s944 = scalar_lea.vmem [#allocation4], 160
    %v945 = vld [vmem:[%s944] sm:$0xff]
    %v946 = vld [vmem:[%s944 + $0x8] sm:$0xff]
    %v947 = vld [vmem:[%s944 + $0x10] sm:$0xff]
    %v948 = vld [vmem:[%s944 + $0x18] sm:$0xff]
    %v949 = vpack.c.bf16 %v940, %v940
    %950 = vmatprep.subr.bf16.mxu0 %v216
    %951 = vmatpush1.bf16.msra.mxu0 %v215
    %952 = vmatprep.subr.bf16.mxu0 %v212
    %953 = vmatpush1.bf16.msra.mxu0 %v211
    %954 = vmatprep.subr.bf16.mxu0 %v208
    %955 = vmatpush1.bf16.msra.mxu0 %v207
    %956 = vmatprep.subr.bf16.mxu0 %v204
    %957 = vmatpush1.bf16.msra.mxu0 %v203
    %958 = vmatprep.subr.bf16.mxu0 %v200
    %959 = vmatpush1.bf16.msra.mxu0 %v199
    %960 = vmatprep.subr.bf16.mxu0 %v196
    %961 = vmatpush1.bf16.msra.mxu0 %v195
    %962 = vmatprep.subr.bf16.mxu0 %v192
    %963 = vmatpush1.bf16.msra.mxu0 %v191
    %964 = vmatprep.subr.bf16.mxu0 %v188
    %965 = vmatpush1.bf16.msra.mxu0 %v187
    %966 = vmatprep.subr.bf16.mxu0 0
    %967 = vmatpush2.bf16.msra.mxu0 0
    %968 = vmatprep.subr.bf16.mxu0 0
    %969 = vmatpush2.bf16.msra.mxu0 0
    %970 = vmatprep.subr.bf16.mxu0 0
    %971 = vmatpush2.bf16.msra.mxu0 0
    %972 = vmatprep.subr.bf16.mxu0 0
    %973 = vmatpush2.bf16.msra.mxu0 0
    %974 = vmatprep.subr.bf16.mxu0 0
    %975 = vmatpush2.bf16.msra.mxu0 0
    %976 = vmatprep.subr.bf16.mxu0 0
    %977 = vmatpush2.bf16.msra.mxu0 0
    %978 = vmatprep.subr.bf16.mxu0 0
    %979 = vmatpush2.bf16.msra.mxu0 0
    %980 = vmatprep.subr.bf16.mxu0 0
    %981 = vmatpush2.bf16.msra.mxu0 0
    %982 = vmatprep.mubr.bf16.mxu0 0
    %983 = vmatmul.mubr.bf16.gmra.mxu0 %v949
    %v984 = vpop.f32.mrf.mxu0
    %v985 = vadd.f32 0.0, %v984
    %v986 = vpop.f32.mrf.mxu0
    %v987 = vadd.f32 0.0, %v986
    %v988 = vpop.f32.mrf.mxu0
    %v989 = vpop.f32.mrf.mxu0
    %990 = vdwg.mxu0
    %991 = vmatprep.subr.bf16.mxu0 %v218
    %992 = vmatpush1.bf16.msra.mxu0 %v217
    %993 = vmatprep.subr.bf16.mxu0 %v214
    %994 = vmatpush1.bf16.msra.mxu0 %v213
    %995 = vmatprep.subr.bf16.mxu0 %v210
    %996 = vmatpush1.bf16.msra.mxu0 %v209
    %997 = vmatprep.subr.bf16.mxu0 %v206
    %998 = vmatpush1.bf16.msra.mxu0 %v205
    %999 = vmatprep.subr.bf16.mxu0 %v202
    %1000 = vmatpush1.bf16.msra.mxu0 %v201
    %1001 = vmatprep.subr.bf16.mxu0 %v198
    %1002 = vmatpush1.bf16.msra.mxu0 %v197
    %1003 = vmatprep.subr.bf16.mxu0 %v194
    %1004 = vmatpush1.bf16.msra.mxu0 %v193
    %1005 = vmatprep.subr.bf16.mxu0 %v190
    %1006 = vmatpush1.bf16.msra.mxu0 %v189
    %1007 = vmatprep.subr.bf16.mxu0 0
    %1008 = vmatpush2.bf16.msra.mxu0 0
    %1009 = vmatprep.subr.bf16.mxu0 0
    %1010 = vmatpush2.bf16.msra.mxu0 0
    %1011 = vmatprep.subr.bf16.mxu0 0
    %1012 = vmatpush2.bf16.msra.mxu0 0
    %1013 = vmatprep.subr.bf16.mxu0 0
    %1014 = vmatpush2.bf16.msra.mxu0 0
    %1015 = vmatprep.subr.bf16.mxu0 0
    %1016 = vmatpush2.bf16.msra.mxu0 0
    %1017 = vmatprep.subr.bf16.mxu0 0
    %1018 = vmatpush2.bf16.msra.mxu0 0
    %1019 = vmatprep.subr.bf16.mxu0 0
    %1020 = vmatpush2.bf16.msra.mxu0 0
    %1021 = vmatprep.subr.bf16.mxu0 0
    %1022 = vmatpush2.bf16.msra.mxu0 0
    %1023 = vmatprep.mubr.bf16.mxu0 0
    %1024 = vmatmul.mubr.bf16.gmra.mxu0 %v949
    %v1025 = vpop.f32.mrf.mxu0
    %v1026 = vadd.f32 0.0, %v1025
    %v1027 = vpop.f32.mrf.mxu0
    %v1028 = vadd.f32 0.0, %v1027
    %v1029 = vpop.f32.mrf.mxu0
    %v1030 = vpop.f32.mrf.mxu0
    %1031 = vdwg.mxu0
    %v1032 = vadd.f32 %v945, %v985
    %v1033 = vadd.f32 %v946, %v987
    %v1034 = vadd.f32 %v947, %v1026
    %v1035 = vadd.f32 %v948, %v1028
    %v1036 = vxor.u32 %v1032, 2147483648
    %v1037 = vmul.f32 %v1036, 1.442695
    %v1038 = vpow.pop %v1037
    %v1039 = vadd.f32 %v1038, 1.0
    %v1040 = vrcp.pop %v1039
    %v1041 = vmul.f32 1.0, %v1040
    %v1042 = vxor.u32 %v1033, 2147483648
    %v1043 = vmul.f32 %v1042, 1.442695
    %v1044 = vpow.pop %v1043
    %v1045 = vadd.f32 %v1044, 1.0
    %v1046 = vrcp.pop %v1045
    %v1047 = vmul.f32 1.0, %v1046
    %v1048 = vtanh.pop %v1034
    %v1049 = vxor.u32 %v1035, 2147483648
    %v1050 = vmul.f32 %v1049, 1.442695
    %v1051 = vpow.pop %v1050
    %v1052 = vadd.f32 %v1051, 1.0
    %v1053 = vrcp.pop %v1052
    %v1054 = vmul.f32 1.0, %v1053
    %v1055 = vmul.f32 %v1047, %v937
    %v1056 = vmul.f32 %v1041, %v1048
    %v1057 = vadd.f32 %v1055, %v1056
    %v1058 = vtanh.pop %v1057
    %v1059 = vmul.f32 %v1054, %v1058
    %v1060 = vstv %s943
    %vm1061 = vcmp.lt.s32.totalorder %v1060, %v50
    %v1062 = vsel %vm1061, 1, 0
    %v1063 = vcvt.s32.f32 %v1062
    %1065 = vset.pattern.permute.xlu0 0
    %1066 = vperm.xlu0 %1065, %v1063
    %v1067 = vpop.permute.xlu0 %1066
    %v1069 = vmul.f32 %v1067, %v1057
    %v1070 = vsub.f32 1.0, %v1063
    %1072 = vset.pattern.permute.xlu0 0
    %1073 = vperm.xlu0 %1072, %v1070
    %v1074 = vpop.permute.xlu0 %1073
    %v1076 = vmul.f32 %v1074, %v937
    %v1077 = vadd.f32 %v1069, %v1076
    %v1078 = vmul.f32 %v1067, %v1059
    %v1079 = vmul.f32 %v1074, %v940
    %v1080 = vadd.f32 %v1078, %v1079
    %s1081 = scalar_lea.vmem [#allocation9], 40
    %1082 = vst [vmem:[%s1081] sm:$0xff] %v1078
    %s1083 = sadd.s32 %s85, 6
    %s1084 = scalar_lea.vmem [#allocation4], 192
    %v1085 = vld [vmem:[%s1084] sm:$0xff]
    %v1086 = vld [vmem:[%s1084 + $0x8] sm:$0xff]
    %v1087 = vld [vmem:[%s1084 + $0x10] sm:$0xff]
    %v1088 = vld [vmem:[%s1084 + $0x18] sm:$0xff]
    %v1089 = vpack.c.bf16 %v1080, %v1080
    %1090 = vmatprep.subr.bf16.mxu0 %v216
    %1091 = vmatpush1.bf16.msra.mxu0 %v215
    %1092 = vmatprep.subr.bf16.mxu0 %v212
    %1093 = vmatpush1.bf16.msra.mxu0 %v211
    %1094 = vmatprep.subr.bf16.mxu0 %v208
    %1095 = vmatpush1.bf16.msra.mxu0 %v207
    %1096 = vmatprep.subr.bf16.mxu0 %v204
    %1097 = vmatpush1.bf16.msra.mxu0 %v203
    %1098 = vmatprep.subr.bf16.mxu0 %v200
    %1099 = vmatpush1.bf16.msra.mxu0 %v199
    %1100 = vmatprep.subr.bf16.mxu0 %v196
    %1101 = vmatpush1.bf16.msra.mxu0 %v195
    %1102 = vmatprep.subr.bf16.mxu0 %v192
    %1103 = vmatpush1.bf16.msra.mxu0 %v191
    %1104 = vmatprep.subr.bf16.mxu0 %v188
    %1105 = vmatpush1.bf16.msra.mxu0 %v187
    %1106 = vmatprep.subr.bf16.mxu0 0
    %1107 = vmatpush2.bf16.msra.mxu0 0
    %1108 = vmatprep.subr.bf16.mxu0 0
    %1109 = vmatpush2.bf16.msra.mxu0 0
    %1110 = vmatprep.subr.bf16.mxu0 0
    %1111 = vmatpush2.bf16.msra.mxu0 0
    %1112 = vmatprep.subr.bf16.mxu0 0
    %1113 = vmatpush2.bf16.msra.mxu0 0
    %1114 = vmatprep.subr.bf16.mxu0 0
    %1115 = vmatpush2.bf16.msra.mxu0 0
    %1116 = vmatprep.subr.bf16.mxu0 0
    %1117 = vmatpush2.bf16.msra.mxu0 0
    %1118 = vmatprep.subr.bf16.mxu0 0
    %1119 = vmatpush2.bf16.msra.mxu0 0
    %1120 = vmatprep.subr.bf16.mxu0 0
    %1121 = vmatpush2.bf16.msra.mxu0 0
    %1122 = vmatprep.mubr.bf16.mxu0 0
    %1123 = vmatmul.mubr.bf16.gmra.mxu0 %v1089
    %v1124 = vpop.f32.mrf.mxu0
    %v1125 = vadd.f32 0.0, %v1124
    %v1126 = vpop.f32.mrf.mxu0
    %v1127 = vadd.f32 0.0, %v1126
    %v1128 = vpop.f32.mrf.mxu0
    %v1129 = vpop.f32.mrf.mxu0
    %1130 = vdwg.mxu0
    %1131 = vmatprep.subr.bf16.mxu0 %v218
    %1132 = vmatpush1.bf16.msra.mxu0 %v217
    %1133 = vmatprep.subr.bf16.mxu0 %v214
    %1134 = vmatpush1.bf16.msra.mxu0 %v213
    %1135 = vmatprep.subr.bf16.mxu0 %v210
    %1136 = vmatpush1.bf16.msra.mxu0 %v209
    %1137 = vmatprep.subr.bf16.mxu0 %v206
    %1138 = vmatpush1.bf16.msra.mxu0 %v205
    %1139 = vmatprep.subr.bf16.mxu0 %v202
    %1140 = vmatpush1.bf16.msra.mxu0 %v201
    %1141 = vmatprep.subr.bf16.mxu0 %v198
    %1142 = vmatpush1.bf16.msra.mxu0 %v197
    %1143 = vmatprep.subr.bf16.mxu0 %v194
    %1144 = vmatpush1.bf16.msra.mxu0 %v193
    %1145 = vmatprep.subr.bf16.mxu0 %v190
    %1146 = vmatpush1.bf16.msra.mxu0 %v189
    %1147 = vmatprep.subr.bf16.mxu0 0
    %1148 = vmatpush2.bf16.msra.mxu0 0
    %1149 = vmatprep.subr.bf16.mxu0 0
    %1150 = vmatpush2.bf16.msra.mxu0 0
    %1151 = vmatprep.subr.bf16.mxu0 0
    %1152 = vmatpush2.bf16.msra.mxu0 0
    %1153 = vmatprep.subr.bf16.mxu0 0
    %1154 = vmatpush2.bf16.msra.mxu0 0
    %1155 = vmatprep.subr.bf16.mxu0 0
    %1156 = vmatpush2.bf16.msra.mxu0 0
    %1157 = vmatprep.subr.bf16.mxu0 0
    %1158 = vmatpush2.bf16.msra.mxu0 0
    %1159 = vmatprep.subr.bf16.mxu0 0
    %1160 = vmatpush2.bf16.msra.mxu0 0
    %1161 = vmatprep.subr.bf16.mxu0 0
    %1162 = vmatpush2.bf16.msra.mxu0 0
    %1163 = vmatprep.mubr.bf16.mxu0 0
    %1164 = vmatmul.mubr.bf16.gmra.mxu0 %v1089
    %v1165 = vpop.f32.mrf.mxu0
    %v1166 = vadd.f32 0.0, %v1165
    %v1167 = vpop.f32.mrf.mxu0
    %v1168 = vadd.f32 0.0, %v1167
    %v1169 = vpop.f32.mrf.mxu0
    %v1170 = vpop.f32.mrf.mxu0
    %1171 = vdwg.mxu0
    %v1172 = vadd.f32 %v1085, %v1125
    %v1173 = vadd.f32 %v1086, %v1127
    %v1174 = vadd.f32 %v1087, %v1166
    %v1175 = vadd.f32 %v1088, %v1168
    %v1176 = vxor.u32 %v1172, 2147483648
    %v1177 = vmul.f32 %v1176, 1.442695
    %v1178 = vpow.pop %v1177
    %v1179 = vadd.f32 %v1178, 1.0
    %v1180 = vrcp.pop %v1179
    %v1181 = vmul.f32 1.0, %v1180
    %v1182 = vxor.u32 %v1173, 2147483648
    %v1183 = vmul.f32 %v1182, 1.442695
    %v1184 = vpow.pop %v1183
    %v1185 = vadd.f32 %v1184, 1.0
    %v1186 = vrcp.pop %v1185
    %v1187 = vmul.f32 1.0, %v1186
    %v1188 = vtanh.pop %v1174
    %v1189 = vxor.u32 %v1175, 2147483648
    %v1190 = vmul.f32 %v1189, 1.442695
    %v1191 = vpow.pop %v1190
    %v1192 = vadd.f32 %v1191, 1.0
    %v1193 = vrcp.pop %v1192
    %v1194 = vmul.f32 1.0, %v1193
    %v1195 = vmul.f32 %v1187, %v1077
    %v1196 = vmul.f32 %v1181, %v1188
    %v1197 = vadd.f32 %v1195, %v1196
    %v1198 = vtanh.pop %v1197
    %v1199 = vmul.f32 %v1194, %v1198
    %v1200 = vstv %s1083
    %vm1201 = vcmp.lt.s32.totalorder %v1200, %v50
    %v1202 = vsel %vm1201, 1, 0
    %v1203 = vcvt.s32.f32 %v1202
    %1205 = vset.pattern.permute.xlu0 0
    %1206 = vperm.xlu0 %1205, %v1203
    %v1207 = vpop.permute.xlu0 %1206
    %v1209 = vmul.f32 %v1207, %v1197
    %v1210 = vsub.f32 1.0, %v1203
    %1212 = vset.pattern.permute.xlu0 0
    %1213 = vperm.xlu0 %1212, %v1210
    %v1214 = vpop.permute.xlu0 %1213
    %v1216 = vmul.f32 %v1214, %v1077
    %v1217 = vadd.f32 %v1209, %v1216
    %v1218 = vmul.f32 %v1207, %v1199
    %v1219 = vmul.f32 %v1214, %v1080
    %v1220 = vadd.f32 %v1218, %v1219
    %s1221 = scalar_lea.vmem [#allocation9], 48
    %1222 = vst [vmem:[%s1221] sm:$0xff] %v1218
    %s1223 = sadd.s32 %s85, 7
    %s1224 = scalar_lea.vmem [#allocation4], 224
    %v1225 = vld [vmem:[%s1224] sm:$0xff]
    %v1226 = vld [vmem:[%s1224 + $0x8] sm:$0xff]
    %v1227 = vld [vmem:[%s1224 + $0x10] sm:$0xff]
    %v1228 = vld [vmem:[%s1224 + $0x18] sm:$0xff]
    %v1229 = vpack.c.bf16 %v1220, %v1220
    %1230 = vmatprep.subr.bf16.mxu0 %v216
    %1231 = vmatpush1.bf16.msra.mxu0 %v215
    %1232 = vmatprep.subr.bf16.mxu0 %v212
    %1233 = vmatpush1.bf16.msra.mxu0 %v211
    %1234 = vmatprep.subr.bf16.mxu0 %v208
    %1235 = vmatpush1.bf16.msra.mxu0 %v207
    %1236 = vmatprep.subr.bf16.mxu0 %v204
    %1237 = vmatpush1.bf16.msra.mxu0 %v203
    %1238 = vmatprep.subr.bf16.mxu0 %v200
    %1239 = vmatpush1.bf16.msra.mxu0 %v199
    %1240 = vmatprep.subr.bf16.mxu0 %v196
    %1241 = vmatpush1.bf16.msra.mxu0 %v195
    %1242 = vmatprep.subr.bf16.mxu0 %v192
    %1243 = vmatpush1.bf16.msra.mxu0 %v191
    %1244 = vmatprep.subr.bf16.mxu0 %v188
    %1245 = vmatpush1.bf16.msra.mxu0 %v187
    %1246 = vmatprep.subr.bf16.mxu0 0
    %1247 = vmatpush2.bf16.msra.mxu0 0
    %1248 = vmatprep.subr.bf16.mxu0 0
    %1249 = vmatpush2.bf16.msra.mxu0 0
    %1250 = vmatprep.subr.bf16.mxu0 0
    %1251 = vmatpush2.bf16.msra.mxu0 0
    %1252 = vmatprep.subr.bf16.mxu0 0
    %1253 = vmatpush2.bf16.msra.mxu0 0
    %1254 = vmatprep.subr.bf16.mxu0 0
    %1255 = vmatpush2.bf16.msra.mxu0 0
    %1256 = vmatprep.subr.bf16.mxu0 0
    %1257 = vmatpush2.bf16.msra.mxu0 0
    %1258 = vmatprep.subr.bf16.mxu0 0
    %1259 = vmatpush2.bf16.msra.mxu0 0
    %1260 = vmatprep.subr.bf16.mxu0 0
    %1261 = vmatpush2.bf16.msra.mxu0 0
    %1262 = vmatprep.mubr.bf16.mxu0 0
    %1263 = vmatmul.mubr.bf16.gmra.mxu0 %v1229
    %v1264 = vpop.f32.mrf.mxu0
    %v1265 = vadd.f32 0.0, %v1264
    %v1266 = vpop.f32.mrf.mxu0
    %v1267 = vadd.f32 0.0, %v1266
    %v1268 = vpop.f32.mrf.mxu0
    %v1269 = vpop.f32.mrf.mxu0
    %1270 = vdwg.mxu0
    %1271 = vmatprep.subr.bf16.mxu0 %v218
    %1272 = vmatpush1.bf16.msra.mxu0 %v217
    %1273 = vmatprep.subr.bf16.mxu0 %v214
    %1274 = vmatpush1.bf16.msra.mxu0 %v213
    %1275 = vmatprep.subr.bf16.mxu0 %v210
    %1276 = vmatpush1.bf16.msra.mxu0 %v209
    %1277 = vmatprep.subr.bf16.mxu0 %v206
    %1278 = vmatpush1.bf16.msra.mxu0 %v205
    %1279 = vmatprep.subr.bf16.mxu0 %v202
    %1280 = vmatpush1.bf16.msra.mxu0 %v201
    %1281 = vmatprep.subr.bf16.mxu0 %v198
    %1282 = vmatpush1.bf16.msra.mxu0 %v197
    %1283 = vmatprep.subr.bf16.mxu0 %v194
    %1284 = vmatpush1.bf16.msra.mxu0 %v193
    %1285 = vmatprep.subr.bf16.mxu0 %v190
    %1286 = vmatpush1.bf16.msra.mxu0 %v189
    %1287 = vmatprep.subr.bf16.mxu0 0
    %1288 = vmatpush2.bf16.msra.mxu0 0
    %1289 = vmatprep.subr.bf16.mxu0 0
    %1290 = vmatpush2.bf16.msra.mxu0 0
    %1291 = vmatprep.subr.bf16.mxu0 0
    %1292 = vmatpush2.bf16.msra.mxu0 0
    %1293 = vmatprep.subr.bf16.mxu0 0
    %1294 = vmatpush2.bf16.msra.mxu0 0
    %1295 = vmatprep.subr.bf16.mxu0 0
    %1296 = vmatpush2.bf16.msra.mxu0 0
    %1297 = vmatprep.subr.bf16.mxu0 0
    %1298 = vmatpush2.bf16.msra.mxu0 0
    %1299 = vmatprep.subr.bf16.mxu0 0
    %1300 = vmatpush2.bf16.msra.mxu0 0
    %1301 = vmatprep.subr.bf16.mxu0 0
    %1302 = vmatpush2.bf16.msra.mxu0 0
    %1303 = vmatprep.mubr.bf16.mxu0 0
    %1304 = vmatmul.mubr.bf16.gmra.mxu0 %v1229
    %v1305 = vpop.f32.mrf.mxu0
    %v1306 = vadd.f32 0.0, %v1305
    %v1307 = vpop.f32.mrf.mxu0
    %v1308 = vadd.f32 0.0, %v1307
    %v1309 = vpop.f32.mrf.mxu0
    %v1310 = vpop.f32.mrf.mxu0
    %1311 = vdwg.mxu0
    %v1312 = vadd.f32 %v1225, %v1265
    %v1313 = vadd.f32 %v1226, %v1267
    %v1314 = vadd.f32 %v1227, %v1306
    %v1315 = vadd.f32 %v1228, %v1308
    %v1316 = vxor.u32 %v1312, 2147483648
    %v1317 = vmul.f32 %v1316, 1.442695
    %v1318 = vpow.pop %v1317
    %v1319 = vadd.f32 %v1318, 1.0
    %v1320 = vrcp.pop %v1319
    %v1321 = vmul.f32 1.0, %v1320
    %v1322 = vxor.u32 %v1313, 2147483648
    %v1323 = vmul.f32 %v1322, 1.442695
    %v1324 = vpow.pop %v1323
    %v1325 = vadd.f32 %v1324, 1.0
    %v1326 = vrcp.pop %v1325
    %v1327 = vmul.f32 1.0, %v1326
    %v1328 = vtanh.pop %v1314
    %v1329 = vxor.u32 %v1315, 2147483648
    %v1330 = vmul.f32 %v1329, 1.442695
    %v1331 = vpow.pop %v1330
    %v1332 = vadd.f32 %v1331, 1.0
    %v1333 = vrcp.pop %v1332
    %v1334 = vmul.f32 1.0, %v1333
    %v1335 = vmul.f32 %v1327, %v1217
    %v1336 = vmul.f32 %v1321, %v1328
    %v1337 = vadd.f32 %v1335, %v1336
    %v1338 = vtanh.pop %v1337
    %v1339 = vmul.f32 %v1334, %v1338
    %v1340 = vstv %s1223
    %vm1341 = vcmp.lt.s32.totalorder %v1340, %v50
    %v1342 = vsel %vm1341, 1, 0
    %v1343 = vcvt.s32.f32 %v1342
    %1345 = vset.pattern.permute.xlu0 0
    %1346 = vperm.xlu0 %1345, %v1343
    %v1347 = vpop.permute.xlu0 %1346
    %v1349 = vmul.f32 %v1347, %v1337
    %v1350 = vsub.f32 1.0, %v1343
    %1352 = vset.pattern.permute.xlu0 0
    %1353 = vperm.xlu0 %1352, %v1350
    %v1354 = vpop.permute.xlu0 %1353
    %v1356 = vmul.f32 %v1354, %v1217
    %v1357 = vadd.f32 %v1349, %v1356
    %v1358 = vmul.f32 %v1347, %v1339
    %v1359 = vmul.f32 %v1354, %v1220
    %v1360 = vadd.f32 %v1358, %v1359
    %s1361 = scalar_lea.vmem [#allocation9], 56
    %1362 = vst [vmem:[%s1361] sm:$0xff] %v1358
    %1363 = vst [vmem:[#allocation2] sm:$0xff] %v1360
    %1364 = vst [vmem:[#allocation3] sm:$0xff] %v1357
    // Predicated region
    $region26: #{tpu_custom_call.1} parent=1 // pred_check
      _
    $region27: #{tpu_custom_call.1} parent=1 // pred_check_branch
      %1366 = sbr.rel (0) target = $region29
    $region28: #{tpu_custom_call.1} parent=1 // pred_region
      %s1368 = ssub.s32 1024, 1024
      %1369 = vsyncadd [#allocation6], %s1368
      %s1370 = sshll.u32 [#allocation9], 4
      %s1371 = int_to_ptr.vmem [resolvable:$true] %s1370
      %1376 = dma.vmem_to_hbm [thread:$0]  %s1371, 1024, %s3, [#allocation6], 128, 128, 8
    $region29: #{tpu_custom_call.1} parent=1 // pred_fallthru
      _
    // Predicated region
    $region30: #{tpu_custom_call.1} parent=1 // pred_check
      _
    $region31: #{tpu_custom_call.1} parent=1 // pred_check_branch
      %1378 = sbr.rel (0) target = $region33
    $region32: #{tpu_custom_call.1} parent=1 // pred_region
      %1379 = dma.done [#allocation6], 1024
    $region33: #{tpu_custom_call.1} parent=1 // pred_fallthru
      _
    %1380 = vsyncpa [#allocation5], 1
    %1381 = vsyncpa [#allocation8], 1
    %1382 = vsyncpa [#allocation6], 1

</llo_original>
